<compile_context>
chip_gen: v7x
topology: tpu7x:2x2x1
jax: 0.10.0
libtpu: 0.0.40
codegen_flags: <defaults>
</compile_context>

<pallas_src>
import functools

import jax
import jax.numpy as jnp
from jax.experimental import pallas as pl
from jax.experimental.pallas import tpu as pltpu

BLOCK_EXPANSION = 1  # basic block


# ------------------------------------------------------------------
# Fractal structure helpers (shared by planning, packing and the kernel)
# ------------------------------------------------------------------
def _spine(node):
    """Left spine of a fractal node: all convs that consume this node's input."""
    spine = [node]
    while "path" in spine[-1]:
        spine.append(spine[-1]["path"][0])
    return spine


def _traverse(node, x, visit_stage):
    """Shared traversal for planning and in-kernel emission.

    visit_stage(conv_list, x) -> list of per-conv outputs (stacked stage).
    Returns the node's output.  Every 2-way torch.mean join is expressed as
    0.5 * (left + right), exactly matching the reference semantics.
    """
    spine = _spine(node)
    outs = visit_stage([s["conv1"] for s in spine], x)
    v = outs[-1]
    for j in range(len(spine) - 2, -1, -1):
        rv = _traverse(spine[j]["path"][1], v, visit_stage)
        v = 0.5 * (outs[j] + rv)
    return v


def _strip(node):
    """Structure-only copy of the param tree (no arrays captured by the kernel)."""
    out = {"conv1": int(node["conv1"][0].shape[-1])}
    if "path" in node:
        out["path"] = [_strip(p) for p in node["path"]]
    return out


# ------------------------------------------------------------------
# Weight packing:  (3,3,cin,cout) + bias  ->  (cout, kpad) row block
#   column layout: (kh*3+kw)*cmax + ci  for the 9 taps, column 9*cmax = bias,
#   remaining columns zero (K padded to 128 so MXU/LHS loads are unmasked).
# ------------------------------------------------------------------
def _pack_conv(w, b, cmax, kpad):
    cin, cout = int(w.shape[2]), int(w.shape[3])
    wt = jnp.transpose(w.reshape(9, cin, cout), (2, 0, 1))        # (cout, 9, cin)
    wt = jnp.pad(wt, ((0, 0), (0, 0), (0, cmax - cin)))           # (cout, 9, cmax)
    wt = wt.reshape(cout, 9 * cmax)
    bias_col = b.reshape(cout, 1).astype(w.dtype)
    zpad = jnp.zeros((cout, kpad - 9 * cmax - 1), w.dtype)
    return jnp.concatenate([wt, bias_col, zpad], axis=1)          # (cout, kpad)


# ------------------------------------------------------------------
# The fused whole-fractal kernel
# ------------------------------------------------------------------
def _make_fractal_kernel(structure, stage_meta, H, W, cmax, kpad):
    HW = H * W
    bias_row = 9 * cmax

    def kernel(x_ref, w_ref, o_ref, patch_ref):
        # Column-validity masks for the horizontal taps (the flattened zero-fill
        # shift already handles the vertical boundary exactly).
        col = jax.lax.broadcasted_iota(jnp.int32, (cmax, HW), 1) % W
        not_first = col != 0
        not_last = col != (W - 1)

        # Patch scratch init: rows [0, 9*cmax) are rewritten each stage, row
        # `bias_row` is all ones (bias term), remaining pad rows stay zero.
        row = jax.lax.broadcasted_iota(jnp.int32, (kpad, HW), 0)
        patch_ref[...] = jnp.where(row == bias_row, 1.0, 0.0).astype(jnp.float32)

        def shift_flat(act, off):
            # t[:, p] = act[:, p + off] if 0 <= p+off < HW else 0   (lane shift)
            if off == 0:
                return act
            fill = jnp.zeros((cmax, abs(off)), act.dtype)
            if off > 0:
                return jnp.concatenate([act[:, off:], fill], axis=1)
            return jnp.concatenate([fill, act[:, :off]], axis=1)

        def conv_stage(act, row_off, n_out):
            # In-kernel im2col: 9 shifted/masked copies of the (cmax, HW) activation.
            for kh in range(3):
                for kw in range(3):
                    oh, ow = kh - 1, kw - 1
                    tap = shift_flat(act, oh * W + ow)
                    if ow == -1:
                        tap = jnp.where(not_first, tap, 0.0)
                    elif ow == 1:
                        tap = jnp.where(not_last, tap, 0.0)
                    t = kh * 3 + kw
                    patch_ref[t * cmax:(t + 1) * cmax, :] = tap
            wk = w_ref[pl.ds(row_off, n_out), :]                   # (n_out, kpad)
            acc = jnp.dot(wk, patch_ref[...],
                          preferred_element_type=jnp.float32)      # (n_out, HW)
            return jnp.maximum(acc, 0.0)                           # bias already fused

        counter = [0]

        def visit(conv_list, act):
            i = counter[0]
            counter[0] += 1
            row_off, couts = stage_meta[i]
            assert len(couts) == len(conv_list)
            y = conv_stage(act, row_off, sum(couts))
            outs, o = [], 0
            for c in couts:
                outs.append(y[o:o + c, :])
                o += c
            return outs

        result = _traverse(structure, x_ref[0], visit)             # (cout, HW) f32
        if result.shape[0] < cmax:
            result = jnp.concatenate(
                [result, jnp.zeros((cmax - result.shape[0], HW), result.dtype)],
                axis=0)
        o_ref[0] = result.astype(o_ref.dtype)

    return kernel


# ------------------------------------------------------------------
# Wrapper: plan stages, pack weights, run the single fused pallas_call
# ------------------------------------------------------------------
def fractal_forward(params, x):
    """x: (B, Cin, H, W) f32 NCHW  ->  (B, Cout, H, W) f32."""
    B, Cin, H, W = x.shape
    HW = H * W
    assert HW % 128 == 0, "H*W must be a multiple of 128 for the lane-dense layout"

    # Plan the stacked-conv schedule (left-spine grouping) on the real param tree.
    stages = []

    def plan_visit(conv_list, _x):
        stages.append(conv_list)
        return [0.0] * len(conv_list)

    _traverse(params, 0.0, plan_visit)

    cout = int(stages[0][0][0].shape[-1])
    cmax = 8
    assert max(Cin, cout) <= cmax, "channel counts > 8 need a retiled kernel"
    kpad = 128                                     # 9*cmax=72 real cols + bias + zeros

    # Pack all conv weights into a single (R, 128) slab, biases folded in.
    w_blocks, stage_meta, off = [], [], 0
    for st in stages:
        couts = [int(w.shape[-1]) for (w, _b) in st]
        stage_meta.append((off, couts))
        for (w_, b_) in st:
            w_blocks.append(_pack_conv(w_, b_, cmax, kpad))
        off += sum(couts)
    w_all = jnp.concatenate(w_blocks, axis=0).astype(jnp.float32)   # (R, kpad)
    R = off

    # Channel-major, spatially-flattened, channel-padded input (lane-dense).
    xp = x.reshape(B, Cin, HW).astype(jnp.float32)
    if Cin < cmax:
        xp = jnp.pad(xp, ((0, 0), (0, cmax - Cin), (0, 0)))

    kernel = _make_fractal_kernel(_strip(params), stage_meta, H, W, cmax, kpad)

    out_packed = pl.pallas_call(
        kernel,
        out_shape=jax.ShapeDtypeStruct((B, cmax, HW), jnp.float32),
        grid=(B,),
        in_specs=[
            pl.BlockSpec((1, cmax, HW), lambda b: (b, 0, 0)),
            pl.BlockSpec((R, kpad), lambda b: (0, 0)),
        ],
        out_specs=pl.BlockSpec((1, cmax, HW), lambda b: (b, 0, 0)),
        scratch_shapes=[pltpu.VMEM((kpad, HW), jnp.float32)],
        compiler_params=pltpu.CompilerParams(
            dimension_semantics=("parallel",),
            vmem_limit_bytes=32 * 1024 * 1024,
        ),
    )(xp, w_all)

    return out_packed[:, :cout, :].reshape(B, cout, H, W)


# ------------------------------------------------------------------
# Deterministic parameter construction, mirroring fractal_path.__init__
# ------------------------------------------------------------------
def init_conv(key, cin, cout):
    kw, kb = jax.random.split(key)
    w = jax.random.normal(kw, (3, 3, cin, cout), jnp.float32) * (2.0 / (9 * cin)) ** 0.5
    b = jax.random.normal(kb, (cout,), jnp.float32) * 0.01
    return (w, b)


def build_fractal_params(key, channels_in, channels_out, fractal_expansion,
                         distance, max_distance):
    key, k1 = jax.random.split(key)
    conv_cin = channels_in if distance == max_distance else channels_out * BLOCK_EXPANSION
    node = {"conv1": init_conv(k1, conv_cin, channels_out)}
    if fractal_expansion > 1:
        key, ka, kb = jax.random.split(key, 3)
        node["path"] = [
            build_fractal_params(ka, channels_in, channels_out,
                                 fractal_expansion - 1, distance, max_distance),
            build_fractal_params(kb, channels_in, channels_out,
                                 fractal_expansion - 1, distance - 1, max_distance),
        ]
    return node


# ------------------------------------------------------------------
# Pure-JAX reference (original mean-of-stack semantics, NCHW)
# ------------------------------------------------------------------
def conv3x3_relu_ref(x, params):
    w, b = params
    y = jax.lax.conv_general_dilated(
        x, w, window_strides=(1, 1), padding="SAME",
        dimension_numbers=("NCHW", "HWIO", "NCHW"),
        precision=jax.lax.Precision.HIGHEST)
    return jnp.maximum(y + b[None, :, None, None], 0.0)


def fractal_forward_ref(node, x):
    y1 = conv3x3_relu_ref(x, node["conv1"])
    if "path" not in node:
        return y1
    z = x
    for sub in node["path"]:
        z = fractal_forward_ref(sub, z)
    return 0.5 * (y1 + z)                          # torch.mean(stack([y1, z]), 0)


# ------------------------------------------------------------------
if __name__ == "__main__":
    key = jax.random.PRNGKey(0)
    kx, kp = jax.random.split(key)

    # Module config: fractal_path(BasicBlock, 4 -> 8, fractal_expansion=3,
    #                             distance=2, max_distance=2, stride=1, drop_path=None)
    B, CIN, COUT, H, W = 2, 4, 8, 16, 16
    FE, DIST, MAX_DIST = 3, 2, 2

    x = jax.random.normal(kx, (B, CIN, H, W), jnp.float32)      # NCHW
    params = build_fractal_params(kp, CIN, COUT, FE, DIST, MAX_DIST)

    run = jax.jit(functools.partial(fractal_forward, params))
    out = jax.block_until_ready(run(x))

    ref = fractal_forward_ref(params, x)
    assert out.shape == (B, COUT, H, W), out.shape
    err = float(jnp.max(jnp.abs(out - ref)))
    # f32 operands throughout; tolerance kept conservative vs. the XLA conv reference.
    assert jnp.allclose(out, ref, atol=5e-2, rtol=5e-2), err

    print("KERNEL_OK")
</pallas_src>

<mosaic_0001>
module attributes {stable_mosaic.version = 11 : i64} {
  func.func @kernel(%arg0: i32, %arg1: memref<1x8x256xf32, #tpu.memory_space<vmem>>, %arg2: memref<56x128xf32, #tpu.memory_space<vmem>>, %arg3: memref<1x8x256xf32, #tpu.memory_space<vmem>>, %arg4: memref<128x256xf32, #tpu.memory_space<vmem>>) attributes {dimension_semantics = [#tpu.dimension_semantics<parallel>], iteration_bounds = array<i64: 2>, scalar_prefetch = 0 : i64, scratch_operands = 1 : i64, tpu.core_type = #tpu.core_type<tc>, window_params = [{transform_indices = @transform_0, window_bounds = array<i64: 1, 8, 256>}, {pipeline_mode = #tpu.pipeline_mode<synchronous>, transform_indices = @transform_1, window_bounds = array<i64: 56, 128>}, {transform_indices = @transform_2, window_bounds = array<i64: 1, 8, 256>}]} {
    %0 = tpu.iota {dimensions = array<i32: 1>} : vector<8x256xi32>
    %c16_i32 = arith.constant 16 : i32
    %c0_i32 = arith.constant 0 : i32
    %1 = arith.cmpi eq, %c16_i32, %c0_i32 : i32
    %c1_i32 = arith.constant 1 : i32
    %2 = arith.select %1, %c1_i32, %c16_i32 : i32
    %3 = vector.broadcast %2 : i32 to vector<8x256xi32>
    %4 = arith.remsi %0, %3 : vector<8x256xi32>
    %c0_i32_0 = arith.constant 0 : i32
    %5 = vector.broadcast %c0_i32_0 : i32 to vector<8x256xi32>
    %6 = arith.cmpi ne, %4, %5 : vector<8x256xi32>
    %c0_i32_1 = arith.constant 0 : i32
    %7 = vector.broadcast %c0_i32_1 : i32 to vector<8x256xi32>
    %8 = arith.cmpi slt, %4, %7 : vector<8x256xi32>
    %c0_i32_2 = arith.constant 0 : i32
    %9 = arith.cmpi slt, %2, %c0_i32_2 : i32
    %10 = vector.broadcast %9 : i1 to vector<8x256xi1>
    %11 = vector.broadcast %10 : vector<8x256xi1> to vector<8x256xi1>
    %12 = arith.xori %8, %11 : vector<8x256xi1>
    %13 = arith.andi %12, %6 : vector<8x256xi1>
    %14 = vector.broadcast %2 : i32 to vector<8x256xi32>
    %15 = arith.addi %4, %14 : vector<8x256xi32>
    %16 = arith.select %13, %15, %4 : vector<8x256xi1>, vector<8x256xi32>
    %c0_i32_3 = arith.constant 0 : i32
    %17 = vector.broadcast %c0_i32_3 : i32 to vector<8x256xi32>
    %18 = arith.cmpi ne, %16, %17 : vector<8x256xi32>
    %c15_i32 = arith.constant 15 : i32
    %19 = vector.broadcast %c15_i32 : i32 to vector<8x256xi32>
    %20 = arith.cmpi ne, %16, %19 : vector<8x256xi32>
    %21 = tpu.iota {dimensions = array<i32: 0>} : vector<128x256xi32>
    %c72_i32 = arith.constant 72 : i32
    %22 = vector.broadcast %c72_i32 : i32 to vector<128x256xi32>
    %23 = arith.cmpi eq, %21, %22 : vector<128x256xi32>
    %cst = arith.constant 1.000000e+00 : f32
    %cst_4 = arith.constant 0.000000e+00 : f32
    %24 = vector.broadcast %cst : f32 to vector<128x256xf32>
    %25 = vector.broadcast %cst_4 : f32 to vector<128x256xf32>
    %26 = arith.select %23, %24, %25 : vector<128x256xi1>, vector<128x256xf32>
    %c0 = arith.constant 0 : index
    %c0_5 = arith.constant 0 : index
    %27 = vector.load %arg4[%c0, %c0_5] : memref<128x256xf32, #tpu.memory_space<vmem>>, vector<128x256xf32>
    tpu.vector_store %arg4[%c0, %c0_5], %26 {strides = array<i32>} : memref<128x256xf32, #tpu.memory_space<vmem>>, vector<128x256xf32>,
    %c0_6 = arith.constant 0 : index
    %c0_7 = arith.constant 0 : index
    %c0_8 = arith.constant 0 : index
    %28 = vector.load %arg1[%c0_6, %c0_7, %c0_8] : memref<1x8x256xf32, #tpu.memory_space<vmem>>, vector<1x8x256xf32>
    %29 = vector.shape_cast %28 : vector<1x8x256xf32> to vector<8x256xf32>
    %cst_9 = arith.constant 0.000000e+00 : f32
    %30 = vector.broadcast %cst_9 : f32 to vector<8x17xf32>
    %31 = vector.extract_strided_slice %29 {offsets = [0, 0], sizes = [8, 239], strides = [1, 1]} : vector<8x256xf32> to vector<8x239xf32>
    %32 = tpu.concatenate %30, %31 in 1 : vector<8x17xf32>, vector<8x239xf32> -> vector<8x256xf32>
    %cst_10 = arith.constant 0.000000e+00 : f32
    %33 = vector.broadcast %cst_10 : f32 to vector<8x256xf32>
    %34 = arith.select %18, %32, %33 : vector<8x256xi1>, vector<8x256xf32>
    %c0_11 = arith.constant 0 : index
    %c0_12 = arith.constant 0 : index
    %35 = vector.load %arg4[%c0_11, %c0_12] : memref<128x256xf32, #tpu.memory_space<vmem>>, vector<8x256xf32>
    tpu.vector_store %arg4[%c0_11, %c0_12], %34 {strides = array<i32>} : memref<128x256xf32, #tpu.memory_space<vmem>>, vector<8x256xf32>,
    %cst_13 = arith.constant 0.000000e+00 : f32
    %36 = vector.broadcast %cst_13 : f32 to vector<8x16xf32>
    %37 = vector.extract_strided_slice %29 {offsets = [0, 0], sizes = [8, 240], strides = [1, 1]} : vector<8x256xf32> to vector<8x240xf32>
    %38 = tpu.concatenate %36, %37 in 1 : vector<8x16xf32>, vector<8x240xf32> -> vector<8x256xf32>
    %c8 = arith.constant 8 : index
    %c0_14 = arith.constant 0 : index
    %39 = vector.load %arg4[%c8, %c0_14] : memref<128x256xf32, #tpu.memory_space<vmem>>, vector<8x256xf32>
    tpu.vector_store %arg4[%c8, %c0_14], %38 {strides = array<i32>} : memref<128x256xf32, #tpu.memory_space<vmem>>, vector<8x256xf32>,
    %cst_15 = arith.constant 0.000000e+00 : f32
    %40 = vector.broadcast %cst_15 : f32 to vector<8x15xf32>
    %41 = vector.extract_strided_slice %29 {offsets = [0, 0], sizes = [8, 241], strides = [1, 1]} : vector<8x256xf32> to vector<8x241xf32>
    %42 = tpu.concatenate %40, %41 in 1 : vector<8x15xf32>, vector<8x241xf32> -> vector<8x256xf32>
    %cst_16 = arith.constant 0.000000e+00 : f32
    %43 = vector.broadcast %cst_16 : f32 to vector<8x256xf32>
    %44 = arith.select %20, %42, %43 : vector<8x256xi1>, vector<8x256xf32>
    %c16 = arith.constant 16 : index
    %c0_17 = arith.constant 0 : index
    %45 = vector.load %arg4[%c16, %c0_17] : memref<128x256xf32, #tpu.memory_space<vmem>>, vector<8x256xf32>
    tpu.vector_store %arg4[%c16, %c0_17], %44 {strides = array<i32>} : memref<128x256xf32, #tpu.memory_space<vmem>>, vector<8x256xf32>,
    %cst_18 = arith.constant 0.000000e+00 : f32
    %46 = vector.broadcast %cst_18 : f32 to vector<8x1xf32>
    %47 = vector.extract_strided_slice %29 {offsets = [0, 0], sizes = [8, 255], strides = [1, 1]} : vector<8x256xf32> to vector<8x255xf32>
    %48 = tpu.concatenate %46, %47 in 1 : vector<8x1xf32>, vector<8x255xf32> -> vector<8x256xf32>
    %cst_19 = arith.constant 0.000000e+00 : f32
    %49 = vector.broadcast %cst_19 : f32 to vector<8x256xf32>
    %50 = arith.select %18, %48, %49 : vector<8x256xi1>, vector<8x256xf32>
    %c24 = arith.constant 24 : index
    %c0_20 = arith.constant 0 : index
    %51 = vector.load %arg4[%c24, %c0_20] : memref<128x256xf32, #tpu.memory_space<vmem>>, vector<8x256xf32>
    tpu.vector_store %arg4[%c24, %c0_20], %50 {strides = array<i32>} : memref<128x256xf32, #tpu.memory_space<vmem>>, vector<8x256xf32>,
    %c32 = arith.constant 32 : index
    %c0_21 = arith.constant 0 : index
    %52 = vector.load %arg4[%c32, %c0_21] : memref<128x256xf32, #tpu.memory_space<vmem>>, vector<8x256xf32>
    tpu.vector_store %arg4[%c32, %c0_21], %29 {strides = array<i32>} : memref<128x256xf32, #tpu.memory_space<vmem>>, vector<8x256xf32>,
    %cst_22 = arith.constant 0.000000e+00 : f32
    %53 = vector.broadcast %cst_22 : f32 to vector<8x1xf32>
    %54 = vector.extract_strided_slice %29 {offsets = [0, 1], sizes = [8, 255], strides = [1, 1]} : vector<8x256xf32> to vector<8x255xf32>
    %55 = tpu.concatenate %54, %53 in 1 : vector<8x255xf32>, vector<8x1xf32> -> vector<8x256xf32>
    %cst_23 = arith.constant 0.000000e+00 : f32
    %56 = vector.broadcast %cst_23 : f32 to vector<8x256xf32>
    %57 = arith.select %20, %55, %56 : vector<8x256xi1>, vector<8x256xf32>
    %c40 = arith.constant 40 : index
    %c0_24 = arith.constant 0 : index
    %58 = vector.load %arg4[%c40, %c0_24] : memref<128x256xf32, #tpu.memory_space<vmem>>, vector<8x256xf32>
    tpu.vector_store %arg4[%c40, %c0_24], %57 {strides = array<i32>} : memref<128x256xf32, #tpu.memory_space<vmem>>, vector<8x256xf32>,
    %cst_25 = arith.constant 0.000000e+00 : f32
    %59 = vector.broadcast %cst_25 : f32 to vector<8x15xf32>
    %60 = vector.extract_strided_slice %29 {offsets = [0, 15], sizes = [8, 241], strides = [1, 1]} : vector<8x256xf32> to vector<8x241xf32>
    %61 = tpu.concatenate %60, %59 in 1 : vector<8x241xf32>, vector<8x15xf32> -> vector<8x256xf32>
    %cst_26 = arith.constant 0.000000e+00 : f32
    %62 = vector.broadcast %cst_26 : f32 to vector<8x256xf32>
    %63 = arith.select %18, %61, %62 : vector<8x256xi1>, vector<8x256xf32>
    %c48 = arith.constant 48 : index
    %c0_27 = arith.constant 0 : index
    %64 = vector.load %arg4[%c48, %c0_27] : memref<128x256xf32, #tpu.memory_space<vmem>>, vector<8x256xf32>
    tpu.vector_store %arg4[%c48, %c0_27], %63 {strides = array<i32>} : memref<128x256xf32, #tpu.memory_space<vmem>>, vector<8x256xf32>,
    %cst_28 = arith.constant 0.000000e+00 : f32
    %65 = vector.broadcast %cst_28 : f32 to vector<8x16xf32>
    %66 = vector.extract_strided_slice %29 {offsets = [0, 16], sizes = [8, 240], strides = [1, 1]} : vector<8x256xf32> to vector<8x240xf32>
    %67 = tpu.concatenate %66, %65 in 1 : vector<8x240xf32>, vector<8x16xf32> -> vector<8x256xf32>
    %c56 = arith.constant 56 : index
    %c0_29 = arith.constant 0 : index
    %68 = vector.load %arg4[%c56, %c0_29] : memref<128x256xf32, #tpu.memory_space<vmem>>, vector<8x256xf32>
    tpu.vector_store %arg4[%c56, %c0_29], %67 {strides = array<i32>} : memref<128x256xf32, #tpu.memory_space<vmem>>, vector<8x256xf32>,
    %cst_30 = arith.constant 0.000000e+00 : f32
    %69 = vector.broadcast %cst_30 : f32 to vector<8x17xf32>
    %70 = vector.extract_strided_slice %29 {offsets = [0, 17], sizes = [8, 239], strides = [1, 1]} : vector<8x256xf32> to vector<8x239xf32>
    %71 = tpu.concatenate %70, %69 in 1 : vector<8x239xf32>, vector<8x17xf32> -> vector<8x256xf32>
    %cst_31 = arith.constant 0.000000e+00 : f32
    %72 = vector.broadcast %cst_31 : f32 to vector<8x256xf32>
    %73 = arith.select %20, %71, %72 : vector<8x256xi1>, vector<8x256xf32>
    %c64 = arith.constant 64 : index
    %c0_32 = arith.constant 0 : index
    %74 = vector.load %arg4[%c64, %c0_32] : memref<128x256xf32, #tpu.memory_space<vmem>>, vector<8x256xf32>
    tpu.vector_store %arg4[%c64, %c0_32], %73 {strides = array<i32>} : memref<128x256xf32, #tpu.memory_space<vmem>>, vector<8x256xf32>,
    %c0_33 = arith.constant 0 : index
    %c0_34 = arith.constant 0 : index
    %75 = vector.load %arg2[%c0_33, %c0_34] : memref<56x128xf32, #tpu.memory_space<vmem>>, vector<24x128xf32>
    %c0_35 = arith.constant 0 : index
    %c0_36 = arith.constant 0 : index
    %76 = vector.load %arg4[%c0_35, %c0_36] : memref<128x256xf32, #tpu.memory_space<vmem>>, vector<128x256xf32>
    %cst_37 = arith.constant dense<0.000000e+00> : vector<24x256xf32>
    %77 = tpu.matmul %75, %76, %cst_37 {dimension_numbers = #tpu.dot_dimension_numbers<[1], [0], [0], [1], [0, 0, 1, 1], [], []>} : vector<24x128xf32>, vector<128x256xf32>, vector<24x256xf32> -> vector<24x256xf32>
    %cst_38 = arith.constant 0.000000e+00 : f32
    %78 = vector.broadcast %cst_38 : f32 to vector<24x256xf32>
    %79 = arith.maximumf %77, %78 : vector<24x256xf32>
    %80 = vector.extract_strided_slice %79 {offsets = [0, 0], sizes = [8, 256], strides = [1, 1]} : vector<24x256xf32> to vector<8x256xf32>
    %81 = vector.extract_strided_slice %79 {offsets = [8, 0], sizes = [8, 256], strides = [1, 1]} : vector<24x256xf32> to vector<8x256xf32>
    %82 = vector.extract_strided_slice %79 {offsets = [16, 0], sizes = [8, 256], strides = [1, 1]} : vector<24x256xf32> to vector<8x256xf32>
    %cst_39 = arith.constant 0.000000e+00 : f32
    %83 = vector.broadcast %cst_39 : f32 to vector<8x17xf32>
    %84 = vector.extract_strided_slice %82 {offsets = [0, 0], sizes = [8, 239], strides = [1, 1]} : vector<8x256xf32> to vector<8x239xf32>
    %85 = tpu.concatenate %83, %84 in 1 : vector<8x17xf32>, vector<8x239xf32> -> vector<8x256xf32>
    %cst_40 = arith.constant 0.000000e+00 : f32
    %86 = vector.broadcast %cst_40 : f32 to vector<8x256xf32>
    %87 = arith.select %18, %85, %86 : vector<8x256xi1>, vector<8x256xf32>
    %c0_41 = arith.constant 0 : index
    %c0_42 = arith.constant 0 : index
    %88 = vector.load %arg4[%c0_41, %c0_42] : memref<128x256xf32, #tpu.memory_space<vmem>>, vector<8x256xf32>
    tpu.vector_store %arg4[%c0_41, %c0_42], %87 {strides = array<i32>} : memref<128x256xf32, #tpu.memory_space<vmem>>, vector<8x256xf32>,
    %cst_43 = arith.constant 0.000000e+00 : f32
    %89 = vector.broadcast %cst_43 : f32 to vector<8x16xf32>
    %90 = vector.extract_strided_slice %82 {offsets = [0, 0], sizes = [8, 240], strides = [1, 1]} : vector<8x256xf32> to vector<8x240xf32>
    %91 = tpu.concatenate %89, %90 in 1 : vector<8x16xf32>, vector<8x240xf32> -> vector<8x256xf32>
    %c8_44 = arith.constant 8 : index
    %c0_45 = arith.constant 0 : index
    %92 = vector.load %arg4[%c8_44, %c0_45] : memref<128x256xf32, #tpu.memory_space<vmem>>, vector<8x256xf32>
    tpu.vector_store %arg4[%c8_44, %c0_45], %91 {strides = array<i32>} : memref<128x256xf32, #tpu.memory_space<vmem>>, vector<8x256xf32>,
    %cst_46 = arith.constant 0.000000e+00 : f32
    %93 = vector.broadcast %cst_46 : f32 to vector<8x15xf32>
    %94 = vector.extract_strided_slice %82 {offsets = [0, 0], sizes = [8, 241], strides = [1, 1]} : vector<8x256xf32> to vector<8x241xf32>
    %95 = tpu.concatenate %93, %94 in 1 : vector<8x15xf32>, vector<8x241xf32> -> vector<8x256xf32>
    %cst_47 = arith.constant 0.000000e+00 : f32
    %96 = vector.broadcast %cst_47 : f32 to vector<8x256xf32>
    %97 = arith.select %20, %95, %96 : vector<8x256xi1>, vector<8x256xf32>
    %c16_48 = arith.constant 16 : index
    %c0_49 = arith.constant 0 : index
    %98 = vector.load %arg4[%c16_48, %c0_49] : memref<128x256xf32, #tpu.memory_space<vmem>>, vector<8x256xf32>
    tpu.vector_store %arg4[%c16_48, %c0_49], %97 {strides = array<i32>} : memref<128x256xf32, #tpu.memory_space<vmem>>, vector<8x256xf32>,
    %cst_50 = arith.constant 0.000000e+00 : f32
    %99 = vector.broadcast %cst_50 : f32 to vector<8x1xf32>
    %100 = vector.extract_strided_slice %82 {offsets = [0, 0], sizes = [8, 255], strides = [1, 1]} : vector<8x256xf32> to vector<8x255xf32>
    %101 = tpu.concatenate %99, %100 in 1 : vector<8x1xf32>, vector<8x255xf32> -> vector<8x256xf32>
    %cst_51 = arith.constant 0.000000e+00 : f32
    %102 = vector.broadcast %cst_51 : f32 to vector<8x256xf32>
    %103 = arith.select %18, %101, %102 : vector<8x256xi1>, vector<8x256xf32>
    %c24_52 = arith.constant 24 : index
    %c0_53 = arith.constant 0 : index
    %104 = vector.load %arg4[%c24_52, %c0_53] : memref<128x256xf32, #tpu.memory_space<vmem>>, vector<8x256xf32>
    tpu.vector_store %arg4[%c24_52, %c0_53], %103 {strides = array<i32>} : memref<128x256xf32, #tpu.memory_space<vmem>>, vector<8x256xf32>,
    %c32_54 = arith.constant 32 : index
    %c0_55 = arith.constant 0 : index
    %105 = vector.load %arg4[%c32_54, %c0_55] : memref<128x256xf32, #tpu.memory_space<vmem>>, vector<8x256xf32>
    tpu.vector_store %arg4[%c32_54, %c0_55], %82 {strides = array<i32>} : memref<128x256xf32, #tpu.memory_space<vmem>>, vector<8x256xf32>,
    %cst_56 = arith.constant 0.000000e+00 : f32
    %106 = vector.broadcast %cst_56 : f32 to vector<8x1xf32>
    %107 = vector.extract_strided_slice %82 {offsets = [0, 1], sizes = [8, 255], strides = [1, 1]} : vector<8x256xf32> to vector<8x255xf32>
    %108 = tpu.concatenate %107, %106 in 1 : vector<8x255xf32>, vector<8x1xf32> -> vector<8x256xf32>
    %cst_57 = arith.constant 0.000000e+00 : f32
    %109 = vector.broadcast %cst_57 : f32 to vector<8x256xf32>
    %110 = arith.select %20, %108, %109 : vector<8x256xi1>, vector<8x256xf32>
    %c40_58 = arith.constant 40 : index
    %c0_59 = arith.constant 0 : index
    %111 = vector.load %arg4[%c40_58, %c0_59] : memref<128x256xf32, #tpu.memory_space<vmem>>, vector<8x256xf32>
    tpu.vector_store %arg4[%c40_58, %c0_59], %110 {strides = array<i32>} : memref<128x256xf32, #tpu.memory_space<vmem>>, vector<8x256xf32>,
    %cst_60 = arith.constant 0.000000e+00 : f32
    %112 = vector.broadcast %cst_60 : f32 to vector<8x15xf32>
    %113 = vector.extract_strided_slice %82 {offsets = [0, 15], sizes = [8, 241], strides = [1, 1]} : vector<8x256xf32> to vector<8x241xf32>
    %114 = tpu.concatenate %113, %112 in 1 : vector<8x241xf32>, vector<8x15xf32> -> vector<8x256xf32>
    %cst_61 = arith.constant 0.000000e+00 : f32
    %115 = vector.broadcast %cst_61 : f32 to vector<8x256xf32>
    %116 = arith.select %18, %114, %115 : vector<8x256xi1>, vector<8x256xf32>
    %c48_62 = arith.constant 48 : index
    %c0_63 = arith.constant 0 : index
    %117 = vector.load %arg4[%c48_62, %c0_63] : memref<128x256xf32, #tpu.memory_space<vmem>>, vector<8x256xf32>
    tpu.vector_store %arg4[%c48_62, %c0_63], %116 {strides = array<i32>} : memref<128x256xf32, #tpu.memory_space<vmem>>, vector<8x256xf32>,
    %cst_64 = arith.constant 0.000000e+00 : f32
    %118 = vector.broadcast %cst_64 : f32 to vector<8x16xf32>
    %119 = vector.extract_strided_slice %82 {offsets = [0, 16], sizes = [8, 240], strides = [1, 1]} : vector<8x256xf32> to vector<8x240xf32>
    %120 = tpu.concatenate %119, %118 in 1 : vector<8x240xf32>, vector<8x16xf32> -> vector<8x256xf32>
    %c56_65 = arith.constant 56 : index
    %c0_66 = arith.constant 0 : index
    %121 = vector.load %arg4[%c56_65, %c0_66] : memref<128x256xf32, #tpu.memory_space<vmem>>, vector<8x256xf32>
    tpu.vector_store %arg4[%c56_65, %c0_66], %120 {strides = array<i32>} : memref<128x256xf32, #tpu.memory_space<vmem>>, vector<8x256xf32>,
    %cst_67 = arith.constant 0.000000e+00 : f32
    %122 = vector.broadcast %cst_67 : f32 to vector<8x17xf32>
    %123 = vector.extract_strided_slice %82 {offsets = [0, 17], sizes = [8, 239], strides = [1, 1]} : vector<8x256xf32> to vector<8x239xf32>
    %124 = tpu.concatenate %123, %122 in 1 : vector<8x239xf32>, vector<8x17xf32> -> vector<8x256xf32>
    %cst_68 = arith.constant 0.000000e+00 : f32
    %125 = vector.broadcast %cst_68 : f32 to vector<8x256xf32>
    %126 = arith.select %20, %124, %125 : vector<8x256xi1>, vector<8x256xf32>
    %c64_69 = arith.constant 64 : index
    %c0_70 = arith.constant 0 : index
    %127 = vector.load %arg4[%c64_69, %c0_70] : memref<128x256xf32, #tpu.memory_space<vmem>>, vector<8x256xf32>
    tpu.vector_store %arg4[%c64_69, %c0_70], %126 {strides = array<i32>} : memref<128x256xf32, #tpu.memory_space<vmem>>, vector<8x256xf32>,
    %c24_71 = arith.constant 24 : index
    %c0_72 = arith.constant 0 : index
    %128 = vector.load %arg2[%c24_71, %c0_72] : memref<56x128xf32, #tpu.memory_space<vmem>>, vector<8x128xf32>
    %c0_73 = arith.constant 0 : index
    %c0_74 = arith.constant 0 : index
    %129 = vector.load %arg4[%c0_73, %c0_74] : memref<128x256xf32, #tpu.memory_space<vmem>>, vector<128x256xf32>
    %cst_75 = arith.constant dense<0.000000e+00> : vector<8x256xf32>
    %130 = tpu.matmul %128, %129, %cst_75 {dimension_numbers = #tpu.dot_dimension_numbers<[1], [0], [0], [1], [0, 0, 1, 1], [], []>} : vector<8x128xf32>, vector<128x256xf32>, vector<8x256xf32> -> vector<8x256xf32>
    %cst_76 = arith.constant 0.000000e+00 : f32
    %131 = vector.broadcast %cst_76 : f32 to vector<8x256xf32>
    %132 = arith.maximumf %130, %131 : vector<8x256xf32>
    %133 = arith.addf %81, %132 : vector<8x256xf32>
    %cst_77 = arith.constant 5.000000e-01 : f32
    %134 = vector.broadcast %cst_77 : f32 to vector<8x256xf32>
    %135 = arith.mulf %134, %133 : vector<8x256xf32>
    %cst_78 = arith.constant 0.000000e+00 : f32
    %136 = vector.broadcast %cst_78 : f32 to vector<8x17xf32>
    %137 = vector.extract_strided_slice %135 {offsets = [0, 0], sizes = [8, 239], strides = [1, 1]} : vector<8x256xf32> to vector<8x239xf32>
    %138 = tpu.concatenate %136, %137 in 1 : vector<8x17xf32>, vector<8x239xf32> -> vector<8x256xf32>
    %cst_79 = arith.constant 0.000000e+00 : f32
    %139 = vector.broadcast %cst_79 : f32 to vector<8x256xf32>
    %140 = arith.select %18, %138, %139 : vector<8x256xi1>, vector<8x256xf32>
    %c0_80 = arith.constant 0 : index
    %c0_81 = arith.constant 0 : index
    %141 = vector.load %arg4[%c0_80, %c0_81] : memref<128x256xf32, #tpu.memory_space<vmem>>, vector<8x256xf32>
    tpu.vector_store %arg4[%c0_80, %c0_81], %140 {strides = array<i32>} : memref<128x256xf32, #tpu.memory_space<vmem>>, vector<8x256xf32>,
    %cst_82 = arith.constant 0.000000e+00 : f32
    %142 = vector.broadcast %cst_82 : f32 to vector<8x16xf32>
    %143 = vector.extract_strided_slice %135 {offsets = [0, 0], sizes = [8, 240], strides = [1, 1]} : vector<8x256xf32> to vector<8x240xf32>
    %144 = tpu.concatenate %142, %143 in 1 : vector<8x16xf32>, vector<8x240xf32> -> vector<8x256xf32>
    %c8_83 = arith.constant 8 : index
    %c0_84 = arith.constant 0 : index
    %145 = vector.load %arg4[%c8_83, %c0_84] : memref<128x256xf32, #tpu.memory_space<vmem>>, vector<8x256xf32>
    tpu.vector_store %arg4[%c8_83, %c0_84], %144 {strides = array<i32>} : memref<128x256xf32, #tpu.memory_space<vmem>>, vector<8x256xf32>,
    %cst_85 = arith.constant 0.000000e+00 : f32
    %146 = vector.broadcast %cst_85 : f32 to vector<8x15xf32>
    %147 = vector.extract_strided_slice %135 {offsets = [0, 0], sizes = [8, 241], strides = [1, 1]} : vector<8x256xf32> to vector<8x241xf32>
    %148 = tpu.concatenate %146, %147 in 1 : vector<8x15xf32>, vector<8x241xf32> -> vector<8x256xf32>
    %cst_86 = arith.constant 0.000000e+00 : f32
    %149 = vector.broadcast %cst_86 : f32 to vector<8x256xf32>
    %150 = arith.select %20, %148, %149 : vector<8x256xi1>, vector<8x256xf32>
    %c16_87 = arith.constant 16 : index
    %c0_88 = arith.constant 0 : index
    %151 = vector.load %arg4[%c16_87, %c0_88] : memref<128x256xf32, #tpu.memory_space<vmem>>, vector<8x256xf32>
    tpu.vector_store %arg4[%c16_87, %c0_88], %150 {strides = array<i32>} : memref<128x256xf32, #tpu.memory_space<vmem>>, vector<8x256xf32>,
    %cst_89 = arith.constant 0.000000e+00 : f32
    %152 = vector.broadcast %cst_89 : f32 to vector<8x1xf32>
    %153 = vector.extract_strided_slice %135 {offsets = [0, 0], sizes = [8, 255], strides = [1, 1]} : vector<8x256xf32> to vector<8x255xf32>
    %154 = tpu.concatenate %152, %153 in 1 : vector<8x1xf32>, vector<8x255xf32> -> vector<8x256xf32>
    %cst_90 = arith.constant 0.000000e+00 : f32
    %155 = vector.broadcast %cst_90 : f32 to vector<8x256xf32>
    %156 = arith.select %18, %154, %155 : vector<8x256xi1>, vector<8x256xf32>
    %c24_91 = arith.constant 24 : index
    %c0_92 = arith.constant 0 : index
    %157 = vector.load %arg4[%c24_91, %c0_92] : memref<128x256xf32, #tpu.memory_space<vmem>>, vector<8x256xf32>
    tpu.vector_store %arg4[%c24_91, %c0_92], %156 {strides = array<i32>} : memref<128x256xf32, #tpu.memory_space<vmem>>, vector<8x256xf32>,
    %c32_93 = arith.constant 32 : index
    %c0_94 = arith.constant 0 : index
    %158 = vector.load %arg4[%c32_93, %c0_94] : memref<128x256xf32, #tpu.memory_space<vmem>>, vector<8x256xf32>
    tpu.vector_store %arg4[%c32_93, %c0_94], %135 {strides = array<i32>} : memref<128x256xf32, #tpu.memory_space<vmem>>, vector<8x256xf32>,
    %cst_95 = arith.constant 0.000000e+00 : f32
    %159 = vector.broadcast %cst_95 : f32 to vector<8x1xf32>
    %160 = vector.extract_strided_slice %135 {offsets = [0, 1], sizes = [8, 255], strides = [1, 1]} : vector<8x256xf32> to vector<8x255xf32>
    %161 = tpu.concatenate %160, %159 in 1 : vector<8x255xf32>, vector<8x1xf32> -> vector<8x256xf32>
    %cst_96 = arith.constant 0.000000e+00 : f32
    %162 = vector.broadcast %cst_96 : f32 to vector<8x256xf32>
    %163 = arith.select %20, %161, %162 : vector<8x256xi1>, vector<8x256xf32>
    %c40_97 = arith.constant 40 : index
    %c0_98 = arith.constant 0 : index
    %164 = vector.load %arg4[%c40_97, %c0_98] : memref<128x256xf32, #tpu.memory_space<vmem>>, vector<8x256xf32>
    tpu.vector_store %arg4[%c40_97, %c0_98], %163 {strides = array<i32>} : memref<128x256xf32, #tpu.memory_space<vmem>>, vector<8x256xf32>,
    %cst_99 = arith.constant 0.000000e+00 : f32
    %165 = vector.broadcast %cst_99 : f32 to vector<8x15xf32>
    %166 = vector.extract_strided_slice %135 {offsets = [0, 15], sizes = [8, 241], strides = [1, 1]} : vector<8x256xf32> to vector<8x241xf32>
    %167 = tpu.concatenate %166, %165 in 1 : vector<8x241xf32>, vector<8x15xf32> -> vector<8x256xf32>
    %cst_100 = arith.constant 0.000000e+00 : f32
    %168 = vector.broadcast %cst_100 : f32 to vector<8x256xf32>
    %169 = arith.select %18, %167, %168 : vector<8x256xi1>, vector<8x256xf32>
    %c48_101 = arith.constant 48 : index
    %c0_102 = arith.constant 0 : index
    %170 = vector.load %arg4[%c48_101, %c0_102] : memref<128x256xf32, #tpu.memory_space<vmem>>, vector<8x256xf32>
    tpu.vector_store %arg4[%c48_101, %c0_102], %169 {strides = array<i32>} : memref<128x256xf32, #tpu.memory_space<vmem>>, vector<8x256xf32>,
    %cst_103 = arith.constant 0.000000e+00 : f32
    %171 = vector.broadcast %cst_103 : f32 to vector<8x16xf32>
    %172 = vector.extract_strided_slice %135 {offsets = [0, 16], sizes = [8, 240], strides = [1, 1]} : vector<8x256xf32> to vector<8x240xf32>
    %173 = tpu.concatenate %172, %171 in 1 : vector<8x240xf32>, vector<8x16xf32> -> vector<8x256xf32>
    %c56_104 = arith.constant 56 : index
    %c0_105 = arith.constant 0 : index
    %174 = vector.load %arg4[%c56_104, %c0_105] : memref<128x256xf32, #tpu.memory_space<vmem>>, vector<8x256xf32>
    tpu.vector_store %arg4[%c56_104, %c0_105], %173 {strides = array<i32>} : memref<128x256xf32, #tpu.memory_space<vmem>>, vector<8x256xf32>,
    %cst_106 = arith.constant 0.000000e+00 : f32
    %175 = vector.broadcast %cst_106 : f32 to vector<8x17xf32>
    %176 = vector.extract_strided_slice %135 {offsets = [0, 17], sizes = [8, 239], strides = [1, 1]} : vector<8x256xf32> to vector<8x239xf32>
    %177 = tpu.concatenate %176, %175 in 1 : vector<8x239xf32>, vector<8x17xf32> -> vector<8x256xf32>
    %cst_107 = arith.constant 0.000000e+00 : f32
    %178 = vector.broadcast %cst_107 : f32 to vector<8x256xf32>
    %179 = arith.select %20, %177, %178 : vector<8x256xi1>, vector<8x256xf32>
    %c64_108 = arith.constant 64 : index
    %c0_109 = arith.constant 0 : index
    %180 = vector.load %arg4[%c64_108, %c0_109] : memref<128x256xf32, #tpu.memory_space<vmem>>, vector<8x256xf32>
    tpu.vector_store %arg4[%c64_108, %c0_109], %179 {strides = array<i32>} : memref<128x256xf32, #tpu.memory_space<vmem>>, vector<8x256xf32>,
    %c32_110 = arith.constant 32 : index
    %c0_111 = arith.constant 0 : index
    %181 = vector.load %arg2[%c32_110, %c0_111] : memref<56x128xf32, #tpu.memory_space<vmem>>, vector<16x128xf32>
    %c0_112 = arith.constant 0 : index
    %c0_113 = arith.constant 0 : index
    %182 = vector.load %arg4[%c0_112, %c0_113] : memref<128x256xf32, #tpu.memory_space<vmem>>, vector<128x256xf32>
    %cst_114 = arith.constant dense<0.000000e+00> : vector<16x256xf32>
    %183 = tpu.matmul %181, %182, %cst_114 {dimension_numbers = #tpu.dot_dimension_numbers<[1], [0], [0], [1], [0, 0, 1, 1], [], []>} : vector<16x128xf32>, vector<128x256xf32>, vector<16x256xf32> -> vector<16x256xf32>
    %cst_115 = arith.constant 0.000000e+00 : f32
    %184 = vector.broadcast %cst_115 : f32 to vector<16x256xf32>
    %185 = arith.maximumf %183, %184 : vector<16x256xf32>
    %186 = vector.extract_strided_slice %185 {offsets = [0, 0], sizes = [8, 256], strides = [1, 1]} : vector<16x256xf32> to vector<8x256xf32>
    %187 = vector.extract_strided_slice %185 {offsets = [8, 0], sizes = [8, 256], strides = [1, 1]} : vector<16x256xf32> to vector<8x256xf32>
    %cst_116 = arith.constant 0.000000e+00 : f32
    %188 = vector.broadcast %cst_116 : f32 to vector<8x17xf32>
    %189 = vector.extract_strided_slice %187 {offsets = [0, 0], sizes = [8, 239], strides = [1, 1]} : vector<8x256xf32> to vector<8x239xf32>
    %190 = tpu.concatenate %188, %189 in 1 : vector<8x17xf32>, vector<8x239xf32> -> vector<8x256xf32>
    %cst_117 = arith.constant 0.000000e+00 : f32
    %191 = vector.broadcast %cst_117 : f32 to vector<8x256xf32>
    %192 = arith.select %18, %190, %191 : vector<8x256xi1>, vector<8x256xf32>
    %c0_118 = arith.constant 0 : index
    %c0_119 = arith.constant 0 : index
    %193 = vector.load %arg4[%c0_118, %c0_119] : memref<128x256xf32, #tpu.memory_space<vmem>>, vector<8x256xf32>
    tpu.vector_store %arg4[%c0_118, %c0_119], %192 {strides = array<i32>} : memref<128x256xf32, #tpu.memory_space<vmem>>, vector<8x256xf32>,
    %cst_120 = arith.constant 0.000000e+00 : f32
    %194 = vector.broadcast %cst_120 : f32 to vector<8x16xf32>
    %195 = vector.extract_strided_slice %187 {offsets = [0, 0], sizes = [8, 240], strides = [1, 1]} : vector<8x256xf32> to vector<8x240xf32>
    %196 = tpu.concatenate %194, %195 in 1 : vector<8x16xf32>, vector<8x240xf32> -> vector<8x256xf32>
    %c8_121 = arith.constant 8 : index
    %c0_122 = arith.constant 0 : index
    %197 = vector.load %arg4[%c8_121, %c0_122] : memref<128x256xf32, #tpu.memory_space<vmem>>, vector<8x256xf32>
    tpu.vector_store %arg4[%c8_121, %c0_122], %196 {strides = array<i32>} : memref<128x256xf32, #tpu.memory_space<vmem>>, vector<8x256xf32>,
    %cst_123 = arith.constant 0.000000e+00 : f32
    %198 = vector.broadcast %cst_123 : f32 to vector<8x15xf32>
    %199 = vector.extract_strided_slice %187 {offsets = [0, 0], sizes = [8, 241], strides = [1, 1]} : vector<8x256xf32> to vector<8x241xf32>
    %200 = tpu.concatenate %198, %199 in 1 : vector<8x15xf32>, vector<8x241xf32> -> vector<8x256xf32>
    %cst_124 = arith.constant 0.000000e+00 : f32
    %201 = vector.broadcast %cst_124 : f32 to vector<8x256xf32>
    %202 = arith.select %20, %200, %201 : vector<8x256xi1>, vector<8x256xf32>
    %c16_125 = arith.constant 16 : index
    %c0_126 = arith.constant 0 : index
    %203 = vector.load %arg4[%c16_125, %c0_126] : memref<128x256xf32, #tpu.memory_space<vmem>>, vector<8x256xf32>
    tpu.vector_store %arg4[%c16_125, %c0_126], %202 {strides = array<i32>} : memref<128x256xf32, #tpu.memory_space<vmem>>, vector<8x256xf32>,
    %cst_127 = arith.constant 0.000000e+00 : f32
    %204 = vector.broadcast %cst_127 : f32 to vector<8x1xf32>
    %205 = vector.extract_strided_slice %187 {offsets = [0, 0], sizes = [8, 255], strides = [1, 1]} : vector<8x256xf32> to vector<8x255xf32>
    %206 = tpu.concatenate %204, %205 in 1 : vector<8x1xf32>, vector<8x255xf32> -> vector<8x256xf32>
    %cst_128 = arith.constant 0.000000e+00 : f32
    %207 = vector.broadcast %cst_128 : f32 to vector<8x256xf32>
    %208 = arith.select %18, %206, %207 : vector<8x256xi1>, vector<8x256xf32>
    %c24_129 = arith.constant 24 : index
    %c0_130 = arith.constant 0 : index
    %209 = vector.load %arg4[%c24_129, %c0_130] : memref<128x256xf32, #tpu.memory_space<vmem>>, vector<8x256xf32>
    tpu.vector_store %arg4[%c24_129, %c0_130], %208 {strides = array<i32>} : memref<128x256xf32, #tpu.memory_space<vmem>>, vector<8x256xf32>,
    %c32_131 = arith.constant 32 : index
    %c0_132 = arith.constant 0 : index
    %210 = vector.load %arg4[%c32_131, %c0_132] : memref<128x256xf32, #tpu.memory_space<vmem>>, vector<8x256xf32>
    tpu.vector_store %arg4[%c32_131, %c0_132], %187 {strides = array<i32>} : memref<128x256xf32, #tpu.memory_space<vmem>>, vector<8x256xf32>,
    %cst_133 = arith.constant 0.000000e+00 : f32
    %211 = vector.broadcast %cst_133 : f32 to vector<8x1xf32>
    %212 = vector.extract_strided_slice %187 {offsets = [0, 1], sizes = [8, 255], strides = [1, 1]} : vector<8x256xf32> to vector<8x255xf32>
    %213 = tpu.concatenate %212, %211 in 1 : vector<8x255xf32>, vector<8x1xf32> -> vector<8x256xf32>
    %cst_134 = arith.constant 0.000000e+00 : f32
    %214 = vector.broadcast %cst_134 : f32 to vector<8x256xf32>
    %215 = arith.select %20, %213, %214 : vector<8x256xi1>, vector<8x256xf32>
    %c40_135 = arith.constant 40 : index
    %c0_136 = arith.constant 0 : index
    %216 = vector.load %arg4[%c40_135, %c0_136] : memref<128x256xf32, #tpu.memory_space<vmem>>, vector<8x256xf32>
    tpu.vector_store %arg4[%c40_135, %c0_136], %215 {strides = array<i32>} : memref<128x256xf32, #tpu.memory_space<vmem>>, vector<8x256xf32>,
    %cst_137 = arith.constant 0.000000e+00 : f32
    %217 = vector.broadcast %cst_137 : f32 to vector<8x15xf32>
    %218 = vector.extract_strided_slice %187 {offsets = [0, 15], sizes = [8, 241], strides = [1, 1]} : vector<8x256xf32> to vector<8x241xf32>
    %219 = tpu.concatenate %218, %217 in 1 : vector<8x241xf32>, vector<8x15xf32> -> vector<8x256xf32>
    %cst_138 = arith.constant 0.000000e+00 : f32
    %220 = vector.broadcast %cst_138 : f32 to vector<8x256xf32>
    %221 = arith.select %18, %219, %220 : vector<8x256xi1>, vector<8x256xf32>
    %c48_139 = arith.constant 48 : index
    %c0_140 = arith.constant 0 : index
    %222 = vector.load %arg4[%c48_139, %c0_140] : memref<128x256xf32, #tpu.memory_space<vmem>>, vector<8x256xf32>
    tpu.vector_store %arg4[%c48_139, %c0_140], %221 {strides = array<i32>} : memref<128x256xf32, #tpu.memory_space<vmem>>, vector<8x256xf32>,
    %cst_141 = arith.constant 0.000000e+00 : f32
    %223 = vector.broadcast %cst_141 : f32 to vector<8x16xf32>
    %224 = vector.extract_strided_slice %187 {offsets = [0, 16], sizes = [8, 240], strides = [1, 1]} : vector<8x256xf32> to vector<8x240xf32>
    %225 = tpu.concatenate %224, %223 in 1 : vector<8x240xf32>, vector<8x16xf32> -> vector<8x256xf32>
    %c56_142 = arith.constant 56 : index
    %c0_143 = arith.constant 0 : index
    %226 = vector.load %arg4[%c56_142, %c0_143] : memref<128x256xf32, #tpu.memory_space<vmem>>, vector<8x256xf32>
    tpu.vector_store %arg4[%c56_142, %c0_143], %225 {strides = array<i32>} : memref<128x256xf32, #tpu.memory_space<vmem>>, vector<8x256xf32>,
    %cst_144 = arith.constant 0.000000e+00 : f32
    %227 = vector.broadcast %cst_144 : f32 to vector<8x17xf32>
    %228 = vector.extract_strided_slice %187 {offsets = [0, 17], sizes = [8, 239], strides = [1, 1]} : vector<8x256xf32> to vector<8x239xf32>
    %229 = tpu.concatenate %228, %227 in 1 : vector<8x239xf32>, vector<8x17xf32> -> vector<8x256xf32>
    %cst_145 = arith.constant 0.000000e+00 : f32
    %230 = vector.broadcast %cst_145 : f32 to vector<8x256xf32>
    %231 = arith.select %20, %229, %230 : vector<8x256xi1>, vector<8x256xf32>
    %c64_146 = arith.constant 64 : index
    %c0_147 = arith.constant 0 : index
    %232 = vector.load %arg4[%c64_146, %c0_147] : memref<128x256xf32, #tpu.memory_space<vmem>>, vector<8x256xf32>
    tpu.vector_store %arg4[%c64_146, %c0_147], %231 {strides = array<i32>} : memref<128x256xf32, #tpu.memory_space<vmem>>, vector<8x256xf32>,
    %c48_148 = arith.constant 48 : index
    %c0_149 = arith.constant 0 : index
    %233 = vector.load %arg2[%c48_148, %c0_149] : memref<56x128xf32, #tpu.memory_space<vmem>>, vector<8x128xf32>
    %c0_150 = arith.constant 0 : index
    %c0_151 = arith.constant 0 : index
    %234 = vector.load %arg4[%c0_150, %c0_151] : memref<128x256xf32, #tpu.memory_space<vmem>>, vector<128x256xf32>
    %cst_152 = arith.constant dense<0.000000e+00> : vector<8x256xf32>
    %235 = tpu.matmul %233, %234, %cst_152 {dimension_numbers = #tpu.dot_dimension_numbers<[1], [0], [0], [1], [0, 0, 1, 1], [], []>} : vector<8x128xf32>, vector<128x256xf32>, vector<8x256xf32> -> vector<8x256xf32>
    %cst_153 = arith.constant 0.000000e+00 : f32
    %236 = vector.broadcast %cst_153 : f32 to vector<8x256xf32>
    %237 = arith.maximumf %235, %236 : vector<8x256xf32>
    %238 = arith.addf %186, %237 : vector<8x256xf32>
    %cst_154 = arith.constant 5.000000e-01 : f32
    %239 = vector.broadcast %cst_154 : f32 to vector<8x256xf32>
    %240 = arith.mulf %239, %238 : vector<8x256xf32>
    %241 = arith.addf %80, %240 : vector<8x256xf32>
    %cst_155 = arith.constant 5.000000e-01 : f32
    %242 = vector.broadcast %cst_155 : f32 to vector<8x256xf32>
    %243 = arith.mulf %242, %241 : vector<8x256xf32>
    %c0_156 = arith.constant 0 : index
    %c0_157 = arith.constant 0 : index
    %c0_158 = arith.constant 0 : index
    %244 = vector.load %arg3[%c0_156, %c0_157, %c0_158] : memref<1x8x256xf32, #tpu.memory_space<vmem>>, vector<1x8x256xf32>
    %245 = vector.shape_cast %244 : vector<1x8x256xf32> to vector<8x256xf32>
    %246 = vector.shape_cast %243 : vector<8x256xf32> to vector<1x8x256xf32>
    tpu.vector_store %arg3[%c0_156, %c0_157, %c0_158], %246 {strides = array<i32>} : memref<1x8x256xf32, #tpu.memory_space<vmem>>, vector<1x8x256xf32>,
    return
  }
  func.func @transform_0(%arg0: i32) -> (i32, i32, i32) {
    %c0_i32 = arith.constant 0 : i32
    %c0_i32_0 = arith.constant 0 : i32
    %c0_i32_1 = arith.constant 0 : i32
    return %arg0, %c0_i32, %c0_i32_0 : i32, i32, i32
  }
  func.func @transform_1(%arg0: i32) -> (i32, i32) {
    %c0_i32 = arith.constant 0 : i32
    %c0_i32_0 = arith.constant 0 : i32
    %c0_i32_1 = arith.constant 0 : i32
    return %c0_i32, %c0_i32_0 : i32, i32
  }
  func.func @transform_2(%arg0: i32) -> (i32, i32, i32) {
    %c0_i32 = arith.constant 0 : i32
    %c0_i32_0 = arith.constant 0 : i32
    %c0_i32_1 = arith.constant 0 : i32
    return %arg0, %c0_i32, %c0_i32_0 : i32, i32, i32
  }
}

</mosaic_0001>

<llo_original>
// kernel: fractal_forward.1
$region0: #{fractal_forward.1}
  #allocation0 [shape = 'u32[]', space=smem, size = 0x4, offset = 0x4, fixed_abs, tag = 'smem constant byte address 0x4 - core index']
  #allocation1 [shape = 'u32[144,128]{1,0:T(1,128)}', space=vmem, size = 0x12000, scoped, tag = 'internal scratch']
  #allocation2 [shape = 'f32[128,256]{1,0:T(8,128)}', space=vmem, size = 0x20000, scoped, tag = 'scratch operand']
  %s0 = inlined_call_operand.vmem [shape: f32[2,8,256], index: 0, kind: input, shape index: {}]
  %s1 = inlined_call_operand.vmem [shape: f32[56,128], index: 1, kind: input, shape index: {}]
  %s2 = inlined_call_operand.vmem [shape: f32[2,8,256], index: 2, kind: output, shape index: {}]
  %s3 = sld [smem:[#allocation0]]
  $region41: #{fractal_forward.1} parent=0
    _
  %s5 = ssub.s32 1, %s3
  %s6 = scalar_select 0, %s5, %s3
  loop: start=0, step=1, limit=4
  $region2: #{fractal_forward.1} parent=0 // loop_pre_header
    _
  $region3: #{fractal_forward.1} parent=0 // loop_header
    %s8 = sphi 0, %s12
    %p9 = scmp.ge.s32.totalorder %s8, 4
    %s18 = sphi 0, %s20
    %s21 = sphi 0, %s18
    %s22 = sphi 0, %s21
    %s38 = sphi 0, %s22
    %s42 = sphi 0, %s42
    %s44 = sphi 0, %s42
    %s45 = sphi 0, %s44
    %s59 = sphi 0, %s45
    %s65 = sphi 0, %s67
    %s68 = sphi 0, %s65
    %s69 = sphi 0, %s68
    %s85 = sphi 0, %s69
  $region4: #{fractal_forward.1} parent=0 // loop_header_branch
    %11 = sbr.rel (%p9) target = $region8
  $region5: #{fractal_forward.1} parent=0 // loop_body
    %s13 = ssub.s32 %s8, 1
    %s14 = ssub.s32 %s8, 2
    %s15 = sadd.s32 %s8, 1
    %s16 = ssub.s32 %s8, %s15
    %p17 = scmp.eq.s32.totalorder %s16, 0
    %s19 = sadd.s32 %s18, 1
    %s20 = scalar_select %p17, %s18, %s19
    %p23 = pneg %p17
    %p24 = scmp.eq.s32.totalorder %s8, 1
    %p25 = por %p23, %p24
    %p26 = scmp.ne.s32.totalorder %s18, %s21
    %p27 = scmp.eq.s32.totalorder %s8, 0
    %p28 = por %p26, %p27
    %p29 = scmp.ne.s32.totalorder %s18, %s21
    %p30 = scmp.eq.s32.totalorder %s13, 1
    %p31 = por %p29, %p30
    %p32 = scmp.ne.s32.totalorder %s21, %s22
    %p33 = scmp.eq.s32.totalorder %s13, 0
    %p34 = por %p32, %p33
    %p35 = scmp.ne.s32.totalorder %s21, %s22
    %p36 = scmp.eq.s32.totalorder %s14, 1
    %p37 = por %p35, %p36
    %p39 = scmp.ne.s32.totalorder %s22, %s38
    %p40 = scmp.eq.s32.totalorder %s14, 0
    %p41 = por %p39, %p40
    %s43 = sadd.s32 %s42, 1
    %p46 = scmp.eq.s32.totalorder %s8, 1
    %p47 = scmp.ne.s32.totalorder %s42, %s44
    %p48 = scmp.eq.s32.totalorder %s8, 0
    %p49 = por %p47, %p48
    %p50 = scmp.ne.s32.totalorder %s42, %s44
    %p51 = scmp.eq.s32.totalorder %s13, 1
    %p52 = por %p50, %p51
    %p53 = scmp.ne.s32.totalorder %s44, %s45
    %p54 = scmp.eq.s32.totalorder %s13, 0
    %p55 = por %p53, %p54
    %p56 = scmp.ne.s32.totalorder %s44, %s45
    %p57 = scmp.eq.s32.totalorder %s14, 1
    %p58 = por %p56, %p57
    %p60 = scmp.ne.s32.totalorder %s45, %s59
    %p61 = scmp.eq.s32.totalorder %s14, 0
    %p62 = por %p60, %p61
    %s63 = ssub.s32 %s8, %s15
    %p64 = scmp.eq.s32.totalorder %s63, 0
    %s66 = sadd.s32 %s65, 1
    %s67 = scalar_select %p64, %s65, %s66
    %p70 = pneg %p64
    %p71 = scmp.eq.s32.totalorder %s8, 1
    %p72 = por %p70, %p71
    %p73 = scmp.ne.s32.totalorder %s65, %s68
    %p74 = scmp.eq.s32.totalorder %s8, 0
    %p75 = por %p73, %p74
    %p76 = scmp.ne.s32.totalorder %s65, %s68
    %p77 = scmp.eq.s32.totalorder %s13, 1
    %p78 = por %p76, %p77
    %p79 = scmp.ne.s32.totalorder %s68, %s69
    %p80 = scmp.eq.s32.totalorder %s13, 0
    %p81 = por %p79, %p80
    %p82 = scmp.ne.s32.totalorder %s68, %s69
    %p83 = scmp.eq.s32.totalorder %s14, 1
    %p84 = por %p82, %p83
    %p86 = scmp.ne.s32.totalorder %s69, %s85
    %p87 = scmp.eq.s32.totalorder %s14, 0
    %p88 = por %p86, %p87
    %p89 = scmp.le.s32.totalorder 1, %s8
    %p90 = scmp.lt.s32.totalorder %s8, 3
    %p91 = pnand %p89, %p90
    %p92 = pneg %p91
    // Predicated region
    $region9: #{fractal_forward.1} parent=5 // pred_check
      _
    $region10: #{fractal_forward.1} parent=5 // pred_check_branch
      %94 = sbr.rel (%p91) target = $region12
    $region11: #{fractal_forward.1} parent=5 // pred_region
      %s95 = ssub.s32 %s8, 1
      // Predicated region
      $region13: #{fractal_forward.1} parent=11 // pred_check
        %p96 = pneg %p55
      $region14: #{fractal_forward.1} parent=11 // pred_check_branch
        %98 = sbr.rel (%p96) target = $region16
      $region15: #{fractal_forward.1} parent=11 // pred_region
        _
      $region16: #{fractal_forward.1} parent=11 // pred_fallthru
        _
    $region12: #{fractal_forward.1} parent=5 // pred_fallthru
      _
    %p99 = scmp.lt.s32.totalorder %s8, 2
    // Predicated region
    $region17: #{fractal_forward.1} parent=5 // pred_check
      %p100 = pneg %p99
    $region18: #{fractal_forward.1} parent=5 // pred_check_branch
      %102 = sbr.rel (%p100) target = $region20
    $region19: #{fractal_forward.1} parent=5 // pred_region
      // Predicated region
      $region21: #{fractal_forward.1} parent=19 // pred_check
        %p103 = pneg %p28
      $region22: #{fractal_forward.1} parent=19 // pred_check_branch
        %105 = sbr.rel (%p103) target = $region24
      $region23: #{fractal_forward.1} parent=19 // pred_region
        %p106 = scmp.lt.s32.totalorder %s8, 1
        %s107 = scalar_select %p106, %s8, 1
        %s108 = smul.addr %s107, 2
        %s109 = smul.addr %s108, 8
        %s110 = scalar_lea.vmem %s0, %s109
      $region24: #{fractal_forward.1} parent=19 // pred_fallthru
        _
    $region20: #{fractal_forward.1} parent=5 // pred_fallthru
      _
    %p111 = scmp.le.s32.totalorder 1, %s8
    %p112 = scmp.lt.s32.totalorder %s8, 3
    %p113 = pnand %p111, %p112
    %p114 = pneg %p113
    // Predicated region
    $region25: #{fractal_forward.1} parent=5 // pred_check
      _
    $region26: #{fractal_forward.1} parent=5 // pred_check_branch
      %116 = sbr.rel (%p113) target = $region28
    $region27: #{fractal_forward.1} parent=5 // pred_region
      %s117 = ssub.s32 %s8, 1
      %p118 = scmp.lt.s32.totalorder %s13, 1
      %s119 = scalar_select %p118, %s13, 1
      %s120 = smul.addr %s119, 2
      %s121 = smul.addr %s120, 8
      %s122 = scalar_lea.vmem %s0, %s121
      %p123 = pneg %p34
      %p124 = pneg %p31
      %p125 = pneg %p55
      %p126 = pneg %p52
      %p127 = pneg %p81
      %p128 = pneg %p78
      %p129 = scmp.lt.s32.totalorder %s13, 1
      %s130 = scalar_select %p129, %s13, 1
      %s131 = smul.addr %s130, 2
      %s132 = smul.addr %s131, 8
      %s133 = scalar_lea.vmem %s2, %s132
      %p134 = scmp.lt.s32.totalorder %s13, 1
      %s135 = scalar_select %p134, %s13, 1
      %s136 = smul.addr %s135, 2
      %s137 = smul.addr %s136, 8
      %s138 = scalar_lea.vmem %s0, %s137
      %p139 = scmp.lt.s32.totalorder %s13, 1
      %s140 = scalar_select %p139, %s13, 1
      %s141 = smul.addr %s140, 2
      %s142 = smul.addr %s141, 8
      %s143 = scalar_lea.vmem %s2, %s142
      %v144 = vlaneseq
      %v145 = vand.u32 %v144, 127
      %v146 = vadd.s32 %v145, 128
      %vm147 = vcmp.lt.s32.totalorder %v145, 0
      %v148 = vsub.s32 0, %v145
      %v149 = vsel %vm147, %v148, %v145
      %v150 = vshrl.u32 %v149, 4
      %v151 = vand.u32 %v149, 15
      %v152 = vsub.s32 0, %v151
      %v153 = vsel %vm147, %v152, %v151
      %vm154 = vcmp.lt.s32.totalorder %v146, 0
      %v155 = vsub.s32 0, %v146
      %v156 = vsel %vm154, %v155, %v146
      %v157 = vshrl.u32 %v156, 4
      %v158 = vand.u32 %v156, 15
      %v159 = vsub.s32 0, %v158
      %v160 = vsel %vm154, %v159, %v158
      %vm161 = vcmp.ne.s32.totalorder %v153, 0
      %vm162 = vcmp.ne.s32.totalorder %v160, 0
      %vm163 = vcmp.lt.s32.totalorder %v153, 0
      %vm164 = vcmp.lt.s32.totalorder %v160, 0
      %vm165 = vmand %vm163, %vm161
      %vm166 = vmand %vm164, %vm162
      %v167 = vadd.s32 %v153, 16
      %v168 = vadd.s32 %v160, 16
      %v169 = vsel %vm165, %v167, %v153
      %v170 = vsel %vm166, %v168, %v160
      %vm171 = vcmp.ne.s32.totalorder %v169, 0
      %vm172 = vcmp.ne.s32.totalorder %v170, 0
      %vm173 = vcmp.ne.s32.totalorder %v169, 15
      %vm174 = vcmp.ne.s32.totalorder %v170, 15
      %v175 = vlaneseq
      %v176 = vshrl.u32 %v175, 7
      %v177 = vadd.s32 %v176, 8
      %v178 = vadd.s32 %v176, 16
      %v179 = vadd.s32 %v176, 24
      %v180 = vadd.s32 %v176, 32
      %v181 = vadd.s32 %v176, 40
      %v182 = vadd.s32 %v176, 48
      %v183 = vadd.s32 %v176, 56
      %v184 = vadd.s32 %v176, 64
      %v185 = vadd.s32 %v176, 72
      %v186 = vadd.s32 %v176, 80
      %v187 = vadd.s32 %v176, 88
      %v188 = vadd.s32 %v176, 96
      %v189 = vadd.s32 %v176, 104
      %v190 = vadd.s32 %v176, 112
      %v191 = vadd.s32 %v176, 120
      %vm192 = vcmp.eq.s32.totalorder %v176, 72
      %vm193 = vcmp.eq.s32.totalorder %v177, 72
      %vm194 = vcmp.eq.s32.totalorder %v178, 72
      %vm195 = vcmp.eq.s32.totalorder %v179, 72
      %vm196 = vcmp.eq.s32.totalorder %v180, 72
      %vm197 = vcmp.eq.s32.totalorder %v181, 72
      %vm198 = vcmp.eq.s32.totalorder %v182, 72
      %vm199 = vcmp.eq.s32.totalorder %v183, 72
      %vm200 = vcmp.eq.s32.totalorder %v184, 72
      %vm201 = vcmp.eq.s32.totalorder %v185, 72
      %vm202 = vcmp.eq.s32.totalorder %v186, 72
      %vm203 = vcmp.eq.s32.totalorder %v187, 72
      %vm204 = vcmp.eq.s32.totalorder %v188, 72
      %vm205 = vcmp.eq.s32.totalorder %v189, 72
      %vm206 = vcmp.eq.s32.totalorder %v190, 72
      %vm207 = vcmp.eq.s32.totalorder %v191, 72
      %v208 = vsel %vm192, 1.0, 0.0
      %v209 = vsel %vm193, 1.0, 0.0
      %v210 = vsel %vm194, 1.0, 0.0
      %v211 = vsel %vm195, 1.0, 0.0
      %v212 = vsel %vm196, 1.0, 0.0
      %v213 = vsel %vm197, 1.0, 0.0
      %v214 = vsel %vm198, 1.0, 0.0
      %v215 = vsel %vm199, 1.0, 0.0
      %v216 = vsel %vm200, 1.0, 0.0
      %v217 = vsel %vm201, 1.0, 0.0
      %v218 = vsel %vm202, 1.0, 0.0
      %v219 = vsel %vm203, 1.0, 0.0
      %v220 = vsel %vm204, 1.0, 0.0
      %v221 = vsel %vm205, 1.0, 0.0
      %v222 = vsel %vm206, 1.0, 0.0
      %v223 = vsel %vm207, 1.0, 0.0
      %224 = vst [vmem:[#allocation2] sm:$0xff] %v208
      %225 = vst [vmem:[#allocation2 + $0x8] sm:$0xff] %v208
      %226 = vst [vmem:[#allocation2 + $0x10] sm:$0xff] %v209
      %227 = vst [vmem:[#allocation2 + $0x18] sm:$0xff] %v209
      %228 = vst [vmem:[#allocation2 + $0x20] sm:$0xff] %v210
      %229 = vst [vmem:[#allocation2 + $0x28] sm:$0xff] %v210
      %230 = vst [vmem:[#allocation2 + $0x30] sm:$0xff] %v211
      %231 = vst [vmem:[#allocation2 + $0x38] sm:$0xff] %v211
      %232 = vst [vmem:[#allocation2 + $0x40] sm:$0xff] %v212
      %233 = vst [vmem:[#allocation2 + $0x48] sm:$0xff] %v212
      %234 = vst [vmem:[#allocation2 + $0x50] sm:$0xff] %v213
      %235 = vst [vmem:[#allocation2 + $0x58] sm:$0xff] %v213
      %236 = vst [vmem:[#allocation2 + $0x60] sm:$0xff] %v214
      %237 = vst [vmem:[#allocation2 + $0x68] sm:$0xff] %v214
      %238 = vst [vmem:[#allocation2 + $0x70] sm:$0xff] %v215
      %239 = vst [vmem:[#allocation2 + $0x78] sm:$0xff] %v215
      %240 = vst [vmem:[#allocation2 + $0x80] sm:$0xff] %v216
      %241 = vst [vmem:[#allocation2 + $0x88] sm:$0xff] %v216
      %242 = vst [vmem:[#allocation2 + $0x90] sm:$0xff] %v217
      %243 = vst [vmem:[#allocation2 + $0x98] sm:$0xff] %v217
      %244 = vst [vmem:[#allocation2 + $0xa0] sm:$0xff] %v218
      %245 = vst [vmem:[#allocation2 + $0xa8] sm:$0xff] %v218
      %246 = vst [vmem:[#allocation2 + $0xb0] sm:$0xff] %v219
      %247 = vst [vmem:[#allocation2 + $0xb8] sm:$0xff] %v219
      %248 = vst [vmem:[#allocation2 + $0xc0] sm:$0xff] %v220
      %249 = vst [vmem:[#allocation2 + $0xc8] sm:$0xff] %v220
      %250 = vst [vmem:[#allocation2 + $0xd0] sm:$0xff] %v221
      %251 = vst [vmem:[#allocation2 + $0xd8] sm:$0xff] %v221
      %252 = vst [vmem:[#allocation2 + $0xe0] sm:$0xff] %v222
      %253 = vst [vmem:[#allocation2 + $0xe8] sm:$0xff] %v222
      %254 = vst [vmem:[#allocation2 + $0xf0] sm:$0xff] %v223
      %255 = vst [vmem:[#allocation2 + $0xf8] sm:$0xff] %v223
      %v256 = vld [vmem:[%s138] sm:$0xff]
      %v257 = vld [vmem:[%s138 + $0x8] sm:$0xff]
      %260 = vrot.lane.b32.xlu0 %v256, 17
      %v261 = vpop.permute.xlu0 %260
      %262 = vrot.lane.b32.xlu0 %v257, 17
      %v263 = vpop.permute.xlu0 %262
      %vm264 = vcmask 138240
      %v265 = vsel %vm264, %v261, %v263
      %v268 = vsel %vm264, 0.0, %v261
      %v269 = vsel %vm171, %v268, 0.0
      %v270 = vsel %vm172, %v265, 0.0
      %271 = vst [vmem:[#allocation2] sm:$0xff] %v269
      %272 = vst [vmem:[#allocation2 + $0x8] sm:$0xff] %v270
      %273 = vrot.lane.b32.xlu0 %v256, 16
      %v274 = vpop.permute.xlu0 %273
      %275 = vrot.lane.b32.xlu0 %v257, 16
      %v276 = vpop.permute.xlu0 %275
      %vm277 = vcmask 130048
      %v278 = vsel %vm277, %v274, %v276
      %v281 = vsel %vm277, 0.0, %v274
      %282 = vst [vmem:[#allocation2 + $0x10] sm:$0xff] %v281
      %283 = vst [vmem:[#allocation2 + $0x18] sm:$0xff] %v278
      %284 = vrot.lane.b32.xlu0 %v256, 15
      %v285 = vpop.permute.xlu0 %284
      %286 = vrot.lane.b32.xlu0 %v257, 15
      %v287 = vpop.permute.xlu0 %286
      %vm288 = vcmask 121856
      %v289 = vsel %vm288, %v285, %v287
      %v292 = vsel %vm288, 0.0, %v285
      %v293 = vsel %vm173, %v292, 0.0
      %v294 = vsel %vm174, %v289, 0.0
      %295 = vst [vmem:[#allocation2 + $0x20] sm:$0xff] %v293
      %296 = vst [vmem:[#allocation2 + $0x28] sm:$0xff] %v294
      %297 = vrot.lane.b32.xlu0 %v256, 1
      %v298 = vpop.permute.xlu0 %297
      %299 = vrot.lane.b32.xlu0 %v257, 1
      %v300 = vpop.permute.xlu0 %299
      %vm301 = vcmask 7168
      %v302 = vsel %vm301, %v298, %v300
      %v305 = vsel %vm301, 0.0, %v298
      %v306 = vsel %vm171, %v305, 0.0
      %v307 = vsel %vm172, %v302, 0.0
      %308 = vst [vmem:[#allocation2 + $0x30] sm:$0xff] %v306
      %309 = vst [vmem:[#allocation2 + $0x38] sm:$0xff] %v307
      %310 = vst [vmem:[#allocation2 + $0x40] sm:$0xff] %v256
      %311 = vst [vmem:[#allocation2 + $0x48] sm:$0xff] %v257
      %312 = vrot.lane.b32.xlu0 %v256, 127
      %v313 = vpop.permute.xlu0 %312
      %314 = vrot.lane.b32.xlu0 %v257, 127
      %v315 = vpop.permute.xlu0 %314
      %vm316 = vcmask 1039360
      %v317 = vsel %vm316, %v313, %v315
      %v320 = vsel %vm316, %v315, 0.0
      %v321 = vsel %vm173, %v317, 0.0
      %v322 = vsel %vm174, %v320, 0.0
      %323 = vst [vmem:[#allocation2 + $0x50] sm:$0xff] %v321
      %324 = vst [vmem:[#allocation2 + $0x58] sm:$0xff] %v322
      %325 = vrot.lane.b32.xlu0 %v256, 113
      %v326 = vpop.permute.xlu0 %325
      %327 = vrot.lane.b32.xlu0 %v257, 113
      %v328 = vpop.permute.xlu0 %327
      %vm329 = vcmask 924672
      %v330 = vsel %vm329, %v326, %v328
      %v333 = vsel %vm329, %v328, 0.0
      %v334 = vsel %vm171, %v330, 0.0
      %v335 = vsel %vm172, %v333, 0.0
      %336 = vst [vmem:[#allocation2 + $0x60] sm:$0xff] %v334
      %337 = vst [vmem:[#allocation2 + $0x68] sm:$0xff] %v335
      %338 = vrot.lane.b32.xlu0 %v256, 112
      %v339 = vpop.permute.xlu0 %338
      %340 = vrot.lane.b32.xlu0 %v257, 112
      %v341 = vpop.permute.xlu0 %340
      %vm342 = vcmask 916480
      %v343 = vsel %vm342, %v339, %v341
      %v346 = vsel %vm342, %v341, 0.0
      %347 = vst [vmem:[#allocation2 + $0x70] sm:$0xff] %v343
      %348 = vst [vmem:[#allocation2 + $0x78] sm:$0xff] %v346
      %349 = vrot.lane.b32.xlu0 %v256, 111
      %v350 = vpop.permute.xlu0 %349
      %351 = vrot.lane.b32.xlu0 %v257, 111
      %v352 = vpop.permute.xlu0 %351
      %vm353 = vcmask 908288
      %v354 = vsel %vm353, %v350, %v352
      %v357 = vsel %vm353, %v352, 0.0
      %v358 = vsel %vm173, %v354, 0.0
      %v359 = vsel %vm174, %v357, 0.0
      %360 = vst [vmem:[#allocation2 + $0x80] sm:$0xff] %v358
      %361 = vst [vmem:[#allocation2 + $0x88] sm:$0xff] %v359
      %v362 = vld [vmem:[%s1] sm:$0xff]
      %v363 = vld [vmem:[%s1 + $0x8] sm:$0xff]
      %v364 = vld [vmem:[%s1 + $0x10] sm:$0xff]
      %v365 = vld [vmem:[#allocation2] sm:$0xff]
      %v366 = vld [vmem:[#allocation2 + $0x8] sm:$0xff]
      %v367 = vld [vmem:[#allocation2 + $0x10] sm:$0xff]
      %v368 = vld [vmem:[#allocation2 + $0x18] sm:$0xff]
      %v369 = vld [vmem:[#allocation2 + $0x20] sm:$0xff]
      %v370 = vld [vmem:[#allocation2 + $0x28] sm:$0xff]
      %v371 = vld [vmem:[#allocation2 + $0x30] sm:$0xff]
      %v372 = vld [vmem:[#allocation2 + $0x38] sm:$0xff]
      %v373 = vld [vmem:[#allocation2 + $0x40] sm:$0xff]
      %v374 = vld [vmem:[#allocation2 + $0x48] sm:$0xff]
      %v375 = vld [vmem:[#allocation2 + $0x50] sm:$0xff]
      %v376 = vld [vmem:[#allocation2 + $0x58] sm:$0xff]
      %v377 = vld [vmem:[#allocation2 + $0x60] sm:$0xff]
      %v378 = vld [vmem:[#allocation2 + $0x68] sm:$0xff]
      %v379 = vld [vmem:[#allocation2 + $0x70] sm:$0xff]
      %v380 = vld [vmem:[#allocation2 + $0x78] sm:$0xff]
      %v381 = vld [vmem:[#allocation2 + $0x80] sm:$0xff]
      %v382 = vld [vmem:[#allocation2 + $0x88] sm:$0xff]
      %v383 = vld [vmem:[#allocation2 + $0x90] sm:$0xff]
      %v384 = vld [vmem:[#allocation2 + $0x98] sm:$0xff]
      %v385 = vld [vmem:[#allocation2 + $0xa0] sm:$0xff]
      %v386 = vld [vmem:[#allocation2 + $0xa8] sm:$0xff]
      %v387 = vld [vmem:[#allocation2 + $0xb0] sm:$0xff]
      %v388 = vld [vmem:[#allocation2 + $0xb8] sm:$0xff]
      %v389 = vld [vmem:[#allocation2 + $0xc0] sm:$0xff]
      %v390 = vld [vmem:[#allocation2 + $0xc8] sm:$0xff]
      %v391 = vld [vmem:[#allocation2 + $0xd0] sm:$0xff]
      %v392 = vld [vmem:[#allocation2 + $0xd8] sm:$0xff]
      %v393 = vld [vmem:[#allocation2 + $0xe0] sm:$0xff]
      %v394 = vld [vmem:[#allocation2 + $0xe8] sm:$0xff]
      %v395 = vld [vmem:[#allocation2 + $0xf0] sm:$0xff]
      %v396 = vld [vmem:[#allocation2 + $0xf8] sm:$0xff]
      %397 = vmatprep.subr.mxu0 %v366
      %398 = vmatpush1.msra.mxu0 %v365
      %399 = vmatprep.subr.mxu0 %v368
      %400 = vmatpush1.msra.mxu0 %v367
      %401 = vmatprep.subr.mxu0 %v370
      %402 = vmatpush1.msra.mxu0 %v369
      %403 = vmatprep.subr.mxu0 %v372
      %404 = vmatpush1.msra.mxu0 %v371
      %405 = vmatprep.subr.mxu0 %v374
      %406 = vmatpush1.msra.mxu0 %v373
      %407 = vmatprep.subr.mxu0 %v376
      %408 = vmatpush1.msra.mxu0 %v375
      %409 = vmatprep.subr.mxu0 %v378
      %410 = vmatpush1.msra.mxu0 %v377
      %411 = vmatprep.subr.mxu0 %v380
      %412 = vmatpush1.msra.mxu0 %v379
      %413 = vmatprep.subr.mxu0 %v382
      %414 = vmatpush1.msra.mxu0 %v381
      %415 = vmatprep.subr.mxu0 %v384
      %416 = vmatpush1.msra.mxu0 %v383
      %417 = vmatprep.subr.mxu0 %v386
      %418 = vmatpush1.msra.mxu0 %v385
      %419 = vmatprep.subr.mxu0 %v388
      %420 = vmatpush1.msra.mxu0 %v387
      %421 = vmatprep.subr.mxu0 %v390
      %422 = vmatpush1.msra.mxu0 %v389
      %423 = vmatprep.subr.mxu0 %v392
      %424 = vmatpush1.msra.mxu0 %v391
      %425 = vmatprep.subr.mxu0 %v394
      %426 = vmatpush1.msra.mxu0 %v393
      %427 = vmatprep.subr.mxu0 %v396
      %428 = vmatpush1.msra.mxu0 %v395
      %429 = vmatprep.subr.mxu0 0.0
      %430 = vmatpush1.msra.mxu0 0.0
      %431 = vmatprep.subr.mxu0 0.0
      %432 = vmatpush1.msra.mxu0 0.0
      %433 = vmatprep.subr.mxu0 0.0
      %434 = vmatpush1.msra.mxu0 0.0
      %435 = vmatprep.subr.mxu0 0.0
      %436 = vmatpush1.msra.mxu0 0.0
      %437 = vmatprep.subr.mxu0 0.0
      %438 = vmatpush1.msra.mxu0 0.0
      %439 = vmatprep.subr.mxu0 0.0
      %440 = vmatpush1.msra.mxu0 0.0
      %441 = vmatprep.subr.mxu0 0.0
      %442 = vmatpush1.msra.mxu0 0.0
      %443 = vmatprep.subr.mxu0 0.0
      %444 = vmatpush1.msra.mxu0 0.0
      %445 = vmatprep.subr.mxu0 0.0
      %446 = vmatpush1.msra.mxu0 0.0
      %447 = vmatprep.subr.mxu0 0.0
      %448 = vmatpush1.msra.mxu0 0.0
      %449 = vmatprep.subr.mxu0 0.0
      %450 = vmatpush1.msra.mxu0 0.0
      %451 = vmatprep.subr.mxu0 0.0
      %452 = vmatpush1.msra.mxu0 0.0
      %453 = vmatprep.subr.mxu0 0.0
      %454 = vmatpush1.msra.mxu0 0.0
      %455 = vmatprep.subr.mxu0 0.0
      %456 = vmatpush1.msra.mxu0 0.0
      %457 = vmatprep.subr.mxu0 0.0
      %458 = vmatpush1.msra.mxu0 0.0
      %459 = vmatprep.subr.mxu0 0.0
      %460 = vmatpush1.msra.mxu0 0.0
      %461 = vmatprep.mubr.f32.mxu0 0.0
      %462 = vmatmul.mubr.f32.gmra.mrb[0].mxu0 %v362
      %v463 = vpop.f32.mrb[0].mxu0
      %v464 = vadd.f32 0.0, %v463
      %v465 = vpop.f32.mrb[0].mxu0
      %v466 = vadd.f32 0.0, %v465
      %467 = vmatprep.mubr.f32.mxu0 0.0
      %468 = vmatmul.mubr.f32.gmra.mrb[0].mxu0 %v363
      %v469 = vpop.f32.mrb[0].mxu0
      %v470 = vadd.f32 0.0, %v469
      %v471 = vpop.f32.mrb[0].mxu0
      %v472 = vadd.f32 0.0, %v471
      %473 = vmatprep.mubr.f32.mxu0 0.0
      %474 = vmatmul.mubr.f32.gmra.mrb[0].mxu0 %v364
      %v475 = vpop.f32.mrb[0].mxu0
      %v476 = vadd.f32 0.0, %v475
      %v477 = vpop.f32.mrb[0].mxu0
      %v478 = vadd.f32 0.0, %v477
      %479 = vdwg.mxu0
      %v480 = vmax.f32 %v464, 0.0
      %v481 = vmax.f32 %v466, 0.0
      %v482 = vmax.f32 %v470, 0.0
      %v483 = vmax.f32 %v472, 0.0
      %v484 = vmax.f32 %v476, 0.0
      %v485 = vmax.f32 %v478, 0.0
      %488 = vrot.lane.b32.xlu0 %v484, 17
      %v489 = vpop.permute.xlu0 %488
      %490 = vrot.lane.b32.xlu0 %v485, 17
      %v491 = vpop.permute.xlu0 %490
      %v492 = vsel %vm264, %v489, %v491
      %v495 = vsel %vm264, 0.0, %v489
      %v496 = vsel %vm171, %v495, 0.0
      %v497 = vsel %vm172, %v492, 0.0
      %498 = vst [vmem:[#allocation2] sm:$0xff] %v496
      %499 = vst [vmem:[#allocation2 + $0x8] sm:$0xff] %v497
      %500 = vrot.lane.b32.xlu0 %v484, 16
      %v501 = vpop.permute.xlu0 %500
      %502 = vrot.lane.b32.xlu0 %v485, 16
      %v503 = vpop.permute.xlu0 %502
      %v504 = vsel %vm277, %v501, %v503
      %v507 = vsel %vm277, 0.0, %v501
      %508 = vst [vmem:[#allocation2 + $0x10] sm:$0xff] %v507
      %509 = vst [vmem:[#allocation2 + $0x18] sm:$0xff] %v504
      %510 = vrot.lane.b32.xlu0 %v484, 15
      %v511 = vpop.permute.xlu0 %510
      %512 = vrot.lane.b32.xlu0 %v485, 15
      %v513 = vpop.permute.xlu0 %512
      %v514 = vsel %vm288, %v511, %v513
      %v517 = vsel %vm288, 0.0, %v511
      %v518 = vsel %vm173, %v517, 0.0
      %v519 = vsel %vm174, %v514, 0.0
      %520 = vst [vmem:[#allocation2 + $0x20] sm:$0xff] %v518
      %521 = vst [vmem:[#allocation2 + $0x28] sm:$0xff] %v519
      %522 = vrot.lane.b32.xlu0 %v484, 1
      %v523 = vpop.permute.xlu0 %522
      %524 = vrot.lane.b32.xlu0 %v485, 1
      %v525 = vpop.permute.xlu0 %524
      %v526 = vsel %vm301, %v523, %v525
      %v529 = vsel %vm301, 0.0, %v523
      %v530 = vsel %vm171, %v529, 0.0
      %v531 = vsel %vm172, %v526, 0.0
      %532 = vst [vmem:[#allocation2 + $0x30] sm:$0xff] %v530
      %533 = vst [vmem:[#allocation2 + $0x38] sm:$0xff] %v531
      %534 = vst [vmem:[#allocation2 + $0x40] sm:$0xff] %v484
      %535 = vst [vmem:[#allocation2 + $0x48] sm:$0xff] %v485
      %536 = vrot.lane.b32.xlu0 %v484, 127
      %v537 = vpop.permute.xlu0 %536
      %538 = vrot.lane.b32.xlu0 %v485, 127
      %v539 = vpop.permute.xlu0 %538
      %v540 = vsel %vm316, %v537, %v539
      %v543 = vsel %vm316, %v539, 0.0
      %v544 = vsel %vm173, %v540, 0.0
      %v545 = vsel %vm174, %v543, 0.0
      %546 = vst [vmem:[#allocation2 + $0x50] sm:$0xff] %v544
      %547 = vst [vmem:[#allocation2 + $0x58] sm:$0xff] %v545
      %548 = vrot.lane.b32.xlu0 %v484, 113
      %v549 = vpop.permute.xlu0 %548
      %550 = vrot.lane.b32.xlu0 %v485, 113
      %v551 = vpop.permute.xlu0 %550
      %v552 = vsel %vm329, %v549, %v551
      %v555 = vsel %vm329, %v551, 0.0
      %v556 = vsel %vm171, %v552, 0.0
      %v557 = vsel %vm172, %v555, 0.0
      %558 = vst [vmem:[#allocation2 + $0x60] sm:$0xff] %v556
      %559 = vst [vmem:[#allocation2 + $0x68] sm:$0xff] %v557
      %560 = vrot.lane.b32.xlu0 %v484, 112
      %v561 = vpop.permute.xlu0 %560
      %562 = vrot.lane.b32.xlu0 %v485, 112
      %v563 = vpop.permute.xlu0 %562
      %v564 = vsel %vm342, %v561, %v563
      %v567 = vsel %vm342, %v563, 0.0
      %568 = vst [vmem:[#allocation2 + $0x70] sm:$0xff] %v564
      %569 = vst [vmem:[#allocation2 + $0x78] sm:$0xff] %v567
      %570 = vrot.lane.b32.xlu0 %v484, 111
      %v571 = vpop.permute.xlu0 %570
      %572 = vrot.lane.b32.xlu0 %v485, 111
      %v573 = vpop.permute.xlu0 %572
      %v574 = vsel %vm353, %v571, %v573
      %v577 = vsel %vm353, %v573, 0.0
      %v578 = vsel %vm173, %v574, 0.0
      %v579 = vsel %vm174, %v577, 0.0
      %580 = vst [vmem:[#allocation2 + $0x80] sm:$0xff] %v578
      %581 = vst [vmem:[#allocation2 + $0x88] sm:$0xff] %v579
      %v582 = vld [vmem:[%s1 + $0x18] sm:$0xff]
      %v583 = vld [vmem:[#allocation2] sm:$0xff]
      %v584 = vld [vmem:[#allocation2 + $0x8] sm:$0xff]
      %v585 = vld [vmem:[#allocation2 + $0x10] sm:$0xff]
      %v586 = vld [vmem:[#allocation2 + $0x18] sm:$0xff]
      %v587 = vld [vmem:[#allocation2 + $0x20] sm:$0xff]
      %v588 = vld [vmem:[#allocation2 + $0x28] sm:$0xff]
      %v589 = vld [vmem:[#allocation2 + $0x30] sm:$0xff]
      %v590 = vld [vmem:[#allocation2 + $0x38] sm:$0xff]
      %v591 = vld [vmem:[#allocation2 + $0x40] sm:$0xff]
      %v592 = vld [vmem:[#allocation2 + $0x48] sm:$0xff]
      %v593 = vld [vmem:[#allocation2 + $0x50] sm:$0xff]
      %v594 = vld [vmem:[#allocation2 + $0x58] sm:$0xff]
      %v595 = vld [vmem:[#allocation2 + $0x60] sm:$0xff]
      %v596 = vld [vmem:[#allocation2 + $0x68] sm:$0xff]
      %v597 = vld [vmem:[#allocation2 + $0x70] sm:$0xff]
      %v598 = vld [vmem:[#allocation2 + $0x78] sm:$0xff]
      %v599 = vld [vmem:[#allocation2 + $0x80] sm:$0xff]
      %v600 = vld [vmem:[#allocation2 + $0x88] sm:$0xff]
      %v601 = vld [vmem:[#allocation2 + $0x90] sm:$0xff]
      %v602 = vld [vmem:[#allocation2 + $0x98] sm:$0xff]
      %v603 = vld [vmem:[#allocation2 + $0xa0] sm:$0xff]
      %v604 = vld [vmem:[#allocation2 + $0xa8] sm:$0xff]
      %v605 = vld [vmem:[#allocation2 + $0xb0] sm:$0xff]
      %v606 = vld [vmem:[#allocation2 + $0xb8] sm:$0xff]
      %v607 = vld [vmem:[#allocation2 + $0xc0] sm:$0xff]
      %v608 = vld [vmem:[#allocation2 + $0xc8] sm:$0xff]
      %v609 = vld [vmem:[#allocation2 + $0xd0] sm:$0xff]
      %v610 = vld [vmem:[#allocation2 + $0xd8] sm:$0xff]
      %v611 = vld [vmem:[#allocation2 + $0xe0] sm:$0xff]
      %v612 = vld [vmem:[#allocation2 + $0xe8] sm:$0xff]
      %v613 = vld [vmem:[#allocation2 + $0xf0] sm:$0xff]
      %v614 = vld [vmem:[#allocation2 + $0xf8] sm:$0xff]
      %615 = vmatprep.subr.mxu0 %v584
      %616 = vmatpush1.msra.mxu0 %v583
      %617 = vmatprep.subr.mxu0 %v586
      %618 = vmatpush1.msra.mxu0 %v585
      %619 = vmatprep.subr.mxu0 %v588
      %620 = vmatpush1.msra.mxu0 %v587
      %621 = vmatprep.subr.mxu0 %v590
      %622 = vmatpush1.msra.mxu0 %v589
      %623 = vmatprep.subr.mxu0 %v592
      %624 = vmatpush1.msra.mxu0 %v591
      %625 = vmatprep.subr.mxu0 %v594
      %626 = vmatpush1.msra.mxu0 %v593
      %627 = vmatprep.subr.mxu0 %v596
      %628 = vmatpush1.msra.mxu0 %v595
      %629 = vmatprep.subr.mxu0 %v598
      %630 = vmatpush1.msra.mxu0 %v597
      %631 = vmatprep.subr.mxu0 %v600
      %632 = vmatpush1.msra.mxu0 %v599
      %633 = vmatprep.subr.mxu0 %v602
      %634 = vmatpush1.msra.mxu0 %v601
      %635 = vmatprep.subr.mxu0 %v604
      %636 = vmatpush1.msra.mxu0 %v603
      %637 = vmatprep.subr.mxu0 %v606
      %638 = vmatpush1.msra.mxu0 %v605
      %639 = vmatprep.subr.mxu0 %v608
      %640 = vmatpush1.msra.mxu0 %v607
      %641 = vmatprep.subr.mxu0 %v610
      %642 = vmatpush1.msra.mxu0 %v609
      %643 = vmatprep.subr.mxu0 %v612
      %644 = vmatpush1.msra.mxu0 %v611
      %645 = vmatprep.subr.mxu0 %v614
      %646 = vmatpush1.msra.mxu0 %v613
      %647 = vmatprep.subr.mxu0 0.0
      %648 = vmatpush1.msra.mxu0 0.0
      %649 = vmatprep.subr.mxu0 0.0
      %650 = vmatpush1.msra.mxu0 0.0
      %651 = vmatprep.subr.mxu0 0.0
      %652 = vmatpush1.msra.mxu0 0.0
      %653 = vmatprep.subr.mxu0 0.0
      %654 = vmatpush1.msra.mxu0 0.0
      %655 = vmatprep.subr.mxu0 0.0
      %656 = vmatpush1.msra.mxu0 0.0
      %657 = vmatprep.subr.mxu0 0.0
      %658 = vmatpush1.msra.mxu0 0.0
      %659 = vmatprep.subr.mxu0 0.0
      %660 = vmatpush1.msra.mxu0 0.0
      %661 = vmatprep.subr.mxu0 0.0
      %662 = vmatpush1.msra.mxu0 0.0
      %663 = vmatprep.subr.mxu0 0.0
      %664 = vmatpush1.msra.mxu0 0.0
      %665 = vmatprep.subr.mxu0 0.0
      %666 = vmatpush1.msra.mxu0 0.0
      %667 = vmatprep.subr.mxu0 0.0
      %668 = vmatpush1.msra.mxu0 0.0
      %669 = vmatprep.subr.mxu0 0.0
      %670 = vmatpush1.msra.mxu0 0.0
      %671 = vmatprep.subr.mxu0 0.0
      %672 = vmatpush1.msra.mxu0 0.0
      %673 = vmatprep.subr.mxu0 0.0
      %674 = vmatpush1.msra.mxu0 0.0
      %675 = vmatprep.subr.mxu0 0.0
      %676 = vmatpush1.msra.mxu0 0.0
      %677 = vmatprep.subr.mxu0 0.0
      %678 = vmatpush1.msra.mxu0 0.0
      %679 = vmatprep.mubr.f32.mxu0 0.0
      %680 = vmatmul.mubr.f32.gmra.mrb[0].mxu0 %v582
      %v681 = vpop.f32.mrb[0].mxu0
      %v682 = vadd.f32 0.0, %v681
      %v683 = vpop.f32.mrb[0].mxu0
      %v684 = vadd.f32 0.0, %v683
      %685 = vdwg.mxu0
      %v686 = vmax.f32 %v682, 0.0
      %v687 = vmax.f32 %v684, 0.0
      %v688 = vadd.f32 %v482, %v686
      %v689 = vadd.f32 %v483, %v687
      %v690 = vmul.f32 %v688, 0.5
      %v691 = vmul.f32 %v689, 0.5
      %694 = vrot.lane.b32.xlu0 %v690, 17
      %v695 = vpop.permute.xlu0 %694
      %696 = vrot.lane.b32.xlu0 %v691, 17
      %v697 = vpop.permute.xlu0 %696
      %v698 = vsel %vm264, %v695, %v697
      %v701 = vsel %vm264, 0.0, %v695
      %v702 = vsel %vm171, %v701, 0.0
      %v703 = vsel %vm172, %v698, 0.0
      %704 = vst [vmem:[#allocation2] sm:$0xff] %v702
      %705 = vst [vmem:[#allocation2 + $0x8] sm:$0xff] %v703
      %706 = vrot.lane.b32.xlu0 %v690, 16
      %v707 = vpop.permute.xlu0 %706
      %708 = vrot.lane.b32.xlu0 %v691, 16
      %v709 = vpop.permute.xlu0 %708
      %v710 = vsel %vm277, %v707, %v709
      %v713 = vsel %vm277, 0.0, %v707
      %714 = vst [vmem:[#allocation2 + $0x10] sm:$0xff] %v713
      %715 = vst [vmem:[#allocation2 + $0x18] sm:$0xff] %v710
      %716 = vrot.lane.b32.xlu0 %v690, 15
      %v717 = vpop.permute.xlu0 %716
      %718 = vrot.lane.b32.xlu0 %v691, 15
      %v719 = vpop.permute.xlu0 %718
      %v720 = vsel %vm288, %v717, %v719
      %v723 = vsel %vm288, 0.0, %v717
      %v724 = vsel %vm173, %v723, 0.0
      %v725 = vsel %vm174, %v720, 0.0
      %726 = vst [vmem:[#allocation2 + $0x20] sm:$0xff] %v724
      %727 = vst [vmem:[#allocation2 + $0x28] sm:$0xff] %v725
      %728 = vrot.lane.b32.xlu0 %v690, 1
      %v729 = vpop.permute.xlu0 %728
      %730 = vrot.lane.b32.xlu0 %v691, 1
      %v731 = vpop.permute.xlu0 %730
      %v732 = vsel %vm301, %v729, %v731
      %v735 = vsel %vm301, 0.0, %v729
      %v736 = vsel %vm171, %v735, 0.0
      %v737 = vsel %vm172, %v732, 0.0
      %738 = vst [vmem:[#allocation2 + $0x30] sm:$0xff] %v736
      %739 = vst [vmem:[#allocation2 + $0x38] sm:$0xff] %v737
      %740 = vst [vmem:[#allocation2 + $0x40] sm:$0xff] %v690
      %741 = vst [vmem:[#allocation2 + $0x48] sm:$0xff] %v691
      %742 = vrot.lane.b32.xlu0 %v690, 127
      %v743 = vpop.permute.xlu0 %742
      %744 = vrot.lane.b32.xlu0 %v691, 127
      %v745 = vpop.permute.xlu0 %744
      %v746 = vsel %vm316, %v743, %v745
      %v749 = vsel %vm316, %v745, 0.0
      %v750 = vsel %vm173, %v746, 0.0
      %v751 = vsel %vm174, %v749, 0.0
      %752 = vst [vmem:[#allocation2 + $0x50] sm:$0xff] %v750
      %753 = vst [vmem:[#allocation2 + $0x58] sm:$0xff] %v751
      %754 = vrot.lane.b32.xlu0 %v690, 113
      %v755 = vpop.permute.xlu0 %754
      %756 = vrot.lane.b32.xlu0 %v691, 113
      %v757 = vpop.permute.xlu0 %756
      %v758 = vsel %vm329, %v755, %v757
      %v761 = vsel %vm329, %v757, 0.0
      %v762 = vsel %vm171, %v758, 0.0
      %v763 = vsel %vm172, %v761, 0.0
      %764 = vst [vmem:[#allocation2 + $0x60] sm:$0xff] %v762
      %765 = vst [vmem:[#allocation2 + $0x68] sm:$0xff] %v763
      %766 = vrot.lane.b32.xlu0 %v690, 112
      %v767 = vpop.permute.xlu0 %766
      %768 = vrot.lane.b32.xlu0 %v691, 112
      %v769 = vpop.permute.xlu0 %768
      %v770 = vsel %vm342, %v767, %v769
      %v773 = vsel %vm342, %v769, 0.0
      %774 = vst [vmem:[#allocation2 + $0x70] sm:$0xff] %v770
      %775 = vst [vmem:[#allocation2 + $0x78] sm:$0xff] %v773
      %776 = vrot.lane.b32.xlu0 %v690, 111
      %v777 = vpop.permute.xlu0 %776
      %778 = vrot.lane.b32.xlu0 %v691, 111
      %v779 = vpop.permute.xlu0 %778
      %v780 = vsel %vm353, %v777, %v779
      %v783 = vsel %vm353, %v779, 0.0
      %v784 = vsel %vm173, %v780, 0.0
      %v785 = vsel %vm174, %v783, 0.0
      %786 = vst [vmem:[#allocation2 + $0x80] sm:$0xff] %v784
      %787 = vst [vmem:[#allocation2 + $0x88] sm:$0xff] %v785
      %v788 = vld [vmem:[%s1 + $0x20] sm:$0xff]
      %v789 = vld [vmem:[%s1 + $0x28] sm:$0xff]
      %v790 = vld [vmem:[#allocation2] sm:$0xff]
      %v791 = vld [vmem:[#allocation2 + $0x8] sm:$0xff]
      %v792 = vld [vmem:[#allocation2 + $0x10] sm:$0xff]
      %v793 = vld [vmem:[#allocation2 + $0x18] sm:$0xff]
      %v794 = vld [vmem:[#allocation2 + $0x20] sm:$0xff]
      %v795 = vld [vmem:[#allocation2 + $0x28] sm:$0xff]
      %v796 = vld [vmem:[#allocation2 + $0x30] sm:$0xff]
      %v797 = vld [vmem:[#allocation2 + $0x38] sm:$0xff]
      %v798 = vld [vmem:[#allocation2 + $0x40] sm:$0xff]
      %v799 = vld [vmem:[#allocation2 + $0x48] sm:$0xff]
      %v800 = vld [vmem:[#allocation2 + $0x50] sm:$0xff]
      %v801 = vld [vmem:[#allocation2 + $0x58] sm:$0xff]
      %v802 = vld [vmem:[#allocation2 + $0x60] sm:$0xff]
      %v803 = vld [vmem:[#allocation2 + $0x68] sm:$0xff]
      %v804 = vld [vmem:[#allocation2 + $0x70] sm:$0xff]
      %v805 = vld [vmem:[#allocation2 + $0x78] sm:$0xff]
      %v806 = vld [vmem:[#allocation2 + $0x80] sm:$0xff]
      %v807 = vld [vmem:[#allocation2 + $0x88] sm:$0xff]
      %v808 = vld [vmem:[#allocation2 + $0x90] sm:$0xff]
      %v809 = vld [vmem:[#allocation2 + $0x98] sm:$0xff]
      %v810 = vld [vmem:[#allocation2 + $0xa0] sm:$0xff]
      %v811 = vld [vmem:[#allocation2 + $0xa8] sm:$0xff]
      %v812 = vld [vmem:[#allocation2 + $0xb0] sm:$0xff]
      %v813 = vld [vmem:[#allocation2 + $0xb8] sm:$0xff]
      %v814 = vld [vmem:[#allocation2 + $0xc0] sm:$0xff]
      %v815 = vld [vmem:[#allocation2 + $0xc8] sm:$0xff]
      %v816 = vld [vmem:[#allocation2 + $0xd0] sm:$0xff]
      %v817 = vld [vmem:[#allocation2 + $0xd8] sm:$0xff]
      %v818 = vld [vmem:[#allocation2 + $0xe0] sm:$0xff]
      %v819 = vld [vmem:[#allocation2 + $0xe8] sm:$0xff]
      %v820 = vld [vmem:[#allocation2 + $0xf0] sm:$0xff]
      %v821 = vld [vmem:[#allocation2 + $0xf8] sm:$0xff]
      %822 = vmatprep.subr.mxu0 %v791
      %823 = vmatpush1.msra.mxu0 %v790
      %824 = vmatprep.subr.mxu0 %v793
      %825 = vmatpush1.msra.mxu0 %v792
      %826 = vmatprep.subr.mxu0 %v795
      %827 = vmatpush1.msra.mxu0 %v794
      %828 = vmatprep.subr.mxu0 %v797
      %829 = vmatpush1.msra.mxu0 %v796
      %830 = vmatprep.subr.mxu0 %v799
      %831 = vmatpush1.msra.mxu0 %v798
      %832 = vmatprep.subr.mxu0 %v801
      %833 = vmatpush1.msra.mxu0 %v800
      %834 = vmatprep.subr.mxu0 %v803
      %835 = vmatpush1.msra.mxu0 %v802
      %836 = vmatprep.subr.mxu0 %v805
      %837 = vmatpush1.msra.mxu0 %v804
      %838 = vmatprep.subr.mxu0 %v807
      %839 = vmatpush1.msra.mxu0 %v806
      %840 = vmatprep.subr.mxu0 %v809
      %841 = vmatpush1.msra.mxu0 %v808
      %842 = vmatprep.subr.mxu0 %v811
      %843 = vmatpush1.msra.mxu0 %v810
      %844 = vmatprep.subr.mxu0 %v813
      %845 = vmatpush1.msra.mxu0 %v812
      %846 = vmatprep.subr.mxu0 %v815
      %847 = vmatpush1.msra.mxu0 %v814
      %848 = vmatprep.subr.mxu0 %v817
      %849 = vmatpush1.msra.mxu0 %v816
      %850 = vmatprep.subr.mxu0 %v819
      %851 = vmatpush1.msra.mxu0 %v818
      %852 = vmatprep.subr.mxu0 %v821
      %853 = vmatpush1.msra.mxu0 %v820
      %854 = vmatprep.subr.mxu0 0.0
      %855 = vmatpush1.msra.mxu0 0.0
      %856 = vmatprep.subr.mxu0 0.0
      %857 = vmatpush1.msra.mxu0 0.0
      %858 = vmatprep.subr.mxu0 0.0
      %859 = vmatpush1.msra.mxu0 0.0
      %860 = vmatprep.subr.mxu0 0.0
      %861 = vmatpush1.msra.mxu0 0.0
      %862 = vmatprep.subr.mxu0 0.0
      %863 = vmatpush1.msra.mxu0 0.0
      %864 = vmatprep.subr.mxu0 0.0
      %865 = vmatpush1.msra.mxu0 0.0
      %866 = vmatprep.subr.mxu0 0.0
      %867 = vmatpush1.msra.mxu0 0.0
      %868 = vmatprep.subr.mxu0 0.0
      %869 = vmatpush1.msra.mxu0 0.0
      %870 = vmatprep.subr.mxu0 0.0
      %871 = vmatpush1.msra.mxu0 0.0
      %872 = vmatprep.subr.mxu0 0.0
      %873 = vmatpush1.msra.mxu0 0.0
      %874 = vmatprep.subr.mxu0 0.0
      %875 = vmatpush1.msra.mxu0 0.0
      %876 = vmatprep.subr.mxu0 0.0
      %877 = vmatpush1.msra.mxu0 0.0
      %878 = vmatprep.subr.mxu0 0.0
      %879 = vmatpush1.msra.mxu0 0.0
      %880 = vmatprep.subr.mxu0 0.0
      %881 = vmatpush1.msra.mxu0 0.0
      %882 = vmatprep.subr.mxu0 0.0
      %883 = vmatpush1.msra.mxu0 0.0
      %884 = vmatprep.subr.mxu0 0.0
      %885 = vmatpush1.msra.mxu0 0.0
      %886 = vmatprep.mubr.f32.mxu0 0.0
      %887 = vmatmul.mubr.f32.gmra.mrb[0].mxu0 %v788
      %v888 = vpop.f32.mrb[0].mxu0
      %v889 = vadd.f32 0.0, %v888
      %v890 = vpop.f32.mrb[0].mxu0
      %v891 = vadd.f32 0.0, %v890
      %892 = vmatprep.mubr.f32.mxu0 0.0
      %893 = vmatmul.mubr.f32.gmra.mrb[0].mxu0 %v789
      %v894 = vpop.f32.mrb[0].mxu0
      %v895 = vadd.f32 0.0, %v894
      %v896 = vpop.f32.mrb[0].mxu0
      %v897 = vadd.f32 0.0, %v896
      %898 = vdwg.mxu0
      %v899 = vmax.f32 %v889, 0.0
      %v900 = vmax.f32 %v891, 0.0
      %v901 = vmax.f32 %v895, 0.0
      %v902 = vmax.f32 %v897, 0.0
      %905 = vrot.lane.b32.xlu0 %v901, 17
      %v906 = vpop.permute.xlu0 %905
      %907 = vrot.lane.b32.xlu0 %v902, 17
      %v908 = vpop.permute.xlu0 %907
      %v909 = vsel %vm264, %v906, %v908
      %v912 = vsel %vm264, 0.0, %v906
      %v913 = vsel %vm171, %v912, 0.0
      %v914 = vsel %vm172, %v909, 0.0
      %915 = vst [vmem:[#allocation2] sm:$0xff] %v913
      %916 = vst [vmem:[#allocation2 + $0x8] sm:$0xff] %v914
      %917 = vrot.lane.b32.xlu0 %v901, 16
      %v918 = vpop.permute.xlu0 %917
      %919 = vrot.lane.b32.xlu0 %v902, 16
      %v920 = vpop.permute.xlu0 %919
      %v921 = vsel %vm277, %v918, %v920
      %v924 = vsel %vm277, 0.0, %v918
      %925 = vst [vmem:[#allocation2 + $0x10] sm:$0xff] %v924
      %926 = vst [vmem:[#allocation2 + $0x18] sm:$0xff] %v921
      %927 = vrot.lane.b32.xlu0 %v901, 15
      %v928 = vpop.permute.xlu0 %927
      %929 = vrot.lane.b32.xlu0 %v902, 15
      %v930 = vpop.permute.xlu0 %929
      %v931 = vsel %vm288, %v928, %v930
      %v934 = vsel %vm288, 0.0, %v928
      %v935 = vsel %vm173, %v934, 0.0
      %v936 = vsel %vm174, %v931, 0.0
      %937 = vst [vmem:[#allocation2 + $0x20] sm:$0xff] %v935
      %938 = vst [vmem:[#allocation2 + $0x28] sm:$0xff] %v936
      %939 = vrot.lane.b32.xlu0 %v901, 1
      %v940 = vpop.permute.xlu0 %939
      %941 = vrot.lane.b32.xlu0 %v902, 1
      %v942 = vpop.permute.xlu0 %941
      %v943 = vsel %vm301, %v940, %v942
      %v946 = vsel %vm301, 0.0, %v940
      %v947 = vsel %vm171, %v946, 0.0
      %v948 = vsel %vm172, %v943, 0.0
      %949 = vst [vmem:[#allocation2 + $0x30] sm:$0xff] %v947
      %950 = vst [vmem:[#allocation2 + $0x38] sm:$0xff] %v948
      %951 = vst [vmem:[#allocation2 + $0x40] sm:$0xff] %v901
      %952 = vst [vmem:[#allocation2 + $0x48] sm:$0xff] %v902
      %953 = vrot.lane.b32.xlu0 %v901, 127
      %v954 = vpop.permute.xlu0 %953
      %955 = vrot.lane.b32.xlu0 %v902, 127
      %v956 = vpop.permute.xlu0 %955
      %v957 = vsel %vm316, %v954, %v956
      %v960 = vsel %vm316, %v956, 0.0
      %v961 = vsel %vm173, %v957, 0.0
      %v962 = vsel %vm174, %v960, 0.0
      %963 = vst [vmem:[#allocation2 + $0x50] sm:$0xff] %v961
      %964 = vst [vmem:[#allocation2 + $0x58] sm:$0xff] %v962
      %965 = vrot.lane.b32.xlu0 %v901, 113
      %v966 = vpop.permute.xlu0 %965
      %967 = vrot.lane.b32.xlu0 %v902, 113
      %v968 = vpop.permute.xlu0 %967
      %v969 = vsel %vm329, %v966, %v968
      %v972 = vsel %vm329, %v968, 0.0
      %v973 = vsel %vm171, %v969, 0.0
      %v974 = vsel %vm172, %v972, 0.0
      %975 = vst [vmem:[#allocation2 + $0x60] sm:$0xff] %v973
      %976 = vst [vmem:[#allocation2 + $0x68] sm:$0xff] %v974
      %977 = vrot.lane.b32.xlu0 %v901, 112
      %v978 = vpop.permute.xlu0 %977
      %979 = vrot.lane.b32.xlu0 %v902, 112
      %v980 = vpop.permute.xlu0 %979
      %v981 = vsel %vm342, %v978, %v980
      %v984 = vsel %vm342, %v980, 0.0
      %985 = vst [vmem:[#allocation2 + $0x70] sm:$0xff] %v981
      %986 = vst [vmem:[#allocation2 + $0x78] sm:$0xff] %v984
      %987 = vrot.lane.b32.xlu0 %v901, 111
      %v988 = vpop.permute.xlu0 %987
      %989 = vrot.lane.b32.xlu0 %v902, 111
      %v990 = vpop.permute.xlu0 %989
      %v991 = vsel %vm353, %v988, %v990
      %v994 = vsel %vm353, %v990, 0.0
      %v995 = vsel %vm173, %v991, 0.0
      %v996 = vsel %vm174, %v994, 0.0
      %997 = vst [vmem:[#allocation2 + $0x80] sm:$0xff] %v995
      %998 = vst [vmem:[#allocation2 + $0x88] sm:$0xff] %v996
      %v999 = vld [vmem:[%s1 + $0x30] sm:$0xff]
      %v1000 = vld [vmem:[#allocation2] sm:$0xff]
      %v1001 = vld [vmem:[#allocation2 + $0x8] sm:$0xff]
      %v1002 = vld [vmem:[#allocation2 + $0x10] sm:$0xff]
      %v1003 = vld [vmem:[#allocation2 + $0x18] sm:$0xff]
      %v1004 = vld [vmem:[#allocation2 + $0x20] sm:$0xff]
      %v1005 = vld [vmem:[#allocation2 + $0x28] sm:$0xff]
      %v1006 = vld [vmem:[#allocation2 + $0x30] sm:$0xff]
      %v1007 = vld [vmem:[#allocation2 + $0x38] sm:$0xff]
      %v1008 = vld [vmem:[#allocation2 + $0x40] sm:$0xff]
      %v1009 = vld [vmem:[#allocation2 + $0x48] sm:$0xff]
      %v1010 = vld [vmem:[#allocation2 + $0x50] sm:$0xff]
      %v1011 = vld [vmem:[#allocation2 + $0x58] sm:$0xff]
      %v1012 = vld [vmem:[#allocation2 + $0x60] sm:$0xff]
      %v1013 = vld [vmem:[#allocation2 + $0x68] sm:$0xff]
      %v1014 = vld [vmem:[#allocation2 + $0x70] sm:$0xff]
      %v1015 = vld [vmem:[#allocation2 + $0x78] sm:$0xff]
      %v1016 = vld [vmem:[#allocation2 + $0x80] sm:$0xff]
      %v1017 = vld [vmem:[#allocation2 + $0x88] sm:$0xff]
      %v1018 = vld [vmem:[#allocation2 + $0x90] sm:$0xff]
      %v1019 = vld [vmem:[#allocation2 + $0x98] sm:$0xff]
      %v1020 = vld [vmem:[#allocation2 + $0xa0] sm:$0xff]
      %v1021 = vld [vmem:[#allocation2 + $0xa8] sm:$0xff]
      %v1022 = vld [vmem:[#allocation2 + $0xb0] sm:$0xff]
      %v1023 = vld [vmem:[#allocation2 + $0xb8] sm:$0xff]
      %v1024 = vld [vmem:[#allocation2 + $0xc0] sm:$0xff]
      %v1025 = vld [vmem:[#allocation2 + $0xc8] sm:$0xff]
      %v1026 = vld [vmem:[#allocation2 + $0xd0] sm:$0xff]
      %v1027 = vld [vmem:[#allocation2 + $0xd8] sm:$0xff]
      %v1028 = vld [vmem:[#allocation2 + $0xe0] sm:$0xff]
      %v1029 = vld [vmem:[#allocation2 + $0xe8] sm:$0xff]
      %v1030 = vld [vmem:[#allocation2 + $0xf0] sm:$0xff]
      %v1031 = vld [vmem:[#allocation2 + $0xf8] sm:$0xff]
      %1032 = vmatprep.subr.mxu0 %v1001
      %1033 = vmatpush1.msra.mxu0 %v1000
      %1034 = vmatprep.subr.mxu0 %v1003
      %1035 = vmatpush1.msra.mxu0 %v1002
      %1036 = vmatprep.subr.mxu0 %v1005
      %1037 = vmatpush1.msra.mxu0 %v1004
      %1038 = vmatprep.subr.mxu0 %v1007
      %1039 = vmatpush1.msra.mxu0 %v1006
      %1040 = vmatprep.subr.mxu0 %v1009
      %1041 = vmatpush1.msra.mxu0 %v1008
      %1042 = vmatprep.subr.mxu0 %v1011
      %1043 = vmatpush1.msra.mxu0 %v1010
      %1044 = vmatprep.subr.mxu0 %v1013
      %1045 = vmatpush1.msra.mxu0 %v1012
      %1046 = vmatprep.subr.mxu0 %v1015
      %1047 = vmatpush1.msra.mxu0 %v1014
      %1048 = vmatprep.subr.mxu0 %v1017
      %1049 = vmatpush1.msra.mxu0 %v1016
      %1050 = vmatprep.subr.mxu0 %v1019
      %1051 = vmatpush1.msra.mxu0 %v1018
      %1052 = vmatprep.subr.mxu0 %v1021
      %1053 = vmatpush1.msra.mxu0 %v1020
      %1054 = vmatprep.subr.mxu0 %v1023
      %1055 = vmatpush1.msra.mxu0 %v1022
      %1056 = vmatprep.subr.mxu0 %v1025
      %1057 = vmatpush1.msra.mxu0 %v1024
      %1058 = vmatprep.subr.mxu0 %v1027
      %1059 = vmatpush1.msra.mxu0 %v1026
      %1060 = vmatprep.subr.mxu0 %v1029
      %1061 = vmatpush1.msra.mxu0 %v1028
      %1062 = vmatprep.subr.mxu0 %v1031
      %1063 = vmatpush1.msra.mxu0 %v1030
      %1064 = vmatprep.subr.mxu0 0.0
      %1065 = vmatpush1.msra.mxu0 0.0
      %1066 = vmatprep.subr.mxu0 0.0
      %1067 = vmatpush1.msra.mxu0 0.0
      %1068 = vmatprep.subr.mxu0 0.0
      %1069 = vmatpush1.msra.mxu0 0.0
      %1070 = vmatprep.subr.mxu0 0.0
      %1071 = vmatpush1.msra.mxu0 0.0
      %1072 = vmatprep.subr.mxu0 0.0
      %1073 = vmatpush1.msra.mxu0 0.0
      %1074 = vmatprep.subr.mxu0 0.0
      %1075 = vmatpush1.msra.mxu0 0.0
      %1076 = vmatprep.subr.mxu0 0.0
      %1077 = vmatpush1.msra.mxu0 0.0
      %1078 = vmatprep.subr.mxu0 0.0
      %1079 = vmatpush1.msra.mxu0 0.0
      %1080 = vmatprep.subr.mxu0 0.0
      %1081 = vmatpush1.msra.mxu0 0.0
      %1082 = vmatprep.subr.mxu0 0.0
      %1083 = vmatpush1.msra.mxu0 0.0
      %1084 = vmatprep.subr.mxu0 0.0
      %1085 = vmatpush1.msra.mxu0 0.0
      %1086 = vmatprep.subr.mxu0 0.0
      %1087 = vmatpush1.msra.mxu0 0.0
      %1088 = vmatprep.subr.mxu0 0.0
      %1089 = vmatpush1.msra.mxu0 0.0
      %1090 = vmatprep.subr.mxu0 0.0
      %1091 = vmatpush1.msra.mxu0 0.0
      %1092 = vmatprep.subr.mxu0 0.0
      %1093 = vmatpush1.msra.mxu0 0.0
      %1094 = vmatprep.subr.mxu0 0.0
      %1095 = vmatpush1.msra.mxu0 0.0
      %1096 = vmatprep.mubr.f32.mxu0 0.0
      %1097 = vmatmul.mubr.f32.gmra.mrb[0].mxu0 %v999
      %v1098 = vpop.f32.mrb[0].mxu0
      %v1099 = vadd.f32 0.0, %v1098
      %v1100 = vpop.f32.mrb[0].mxu0
      %v1101 = vadd.f32 0.0, %v1100
      %1102 = vdwg.mxu0
      %v1103 = vmax.f32 %v1099, 0.0
      %v1104 = vmax.f32 %v1101, 0.0
      %v1105 = vadd.f32 %v899, %v1103
      %v1106 = vadd.f32 %v900, %v1104
      %v1107 = vmul.f32 %v1105, 0.5
      %v1108 = vmul.f32 %v1106, 0.5
      %v1109 = vadd.f32 %v480, %v1107
      %v1110 = vadd.f32 %v481, %v1108
      %v1111 = vmul.f32 %v1109, 0.5
      %v1112 = vmul.f32 %v1110, 0.5
      %1113 = vst [vmem:[%s143] sm:$0xff] %v1111
      %1114 = vst [vmem:[%s143 + $0x8] sm:$0xff] %v1112
      %p1115 = scmp.lt.s32.totalorder %s13, 1
      %s1116 = scalar_select %p1115, %s13, 1
      %s1117 = smul.addr %s1116, 2
      %s1118 = smul.addr %s1117, 8
      %s1119 = scalar_lea.vmem %s2, %s1118
      // Predicated region
      $region29: #{fractal_forward.1} parent=27 // pred_check
        %p1120 = pneg %p78
      $region30: #{fractal_forward.1} parent=27 // pred_check_branch
        %1122 = sbr.rel (%p1120) target = $region32
      $region31: #{fractal_forward.1} parent=27 // pred_region
        _
      $region32: #{fractal_forward.1} parent=27 // pred_fallthru
        _
    $region28: #{fractal_forward.1} parent=5 // pred_fallthru
      _
    %p1123 = scmp.le.s32.totalorder 2, %s8
    // Predicated region
    $region33: #{fractal_forward.1} parent=5 // pred_check
      %p1124 = pneg %p1123
    $region34: #{fractal_forward.1} parent=5 // pred_check_branch
      %1126 = sbr.rel (%p1124) target = $region36
    $region35: #{fractal_forward.1} parent=5 // pred_region
      %s1127 = ssub.s32 %s8, 2
      // Predicated region
      $region37: #{fractal_forward.1} parent=35 // pred_check
        %p1128 = pneg %p84
      $region38: #{fractal_forward.1} parent=35 // pred_check_branch
        %1130 = sbr.rel (%p1128) target = $region40
      $region39: #{fractal_forward.1} parent=35 // pred_region
        %p1131 = scmp.lt.s32.totalorder %s14, 1
        %s1132 = scalar_select %p1131, %s14, 1
        %s1133 = smul.addr %s1132, 2
        %s1134 = smul.addr %s1133, 8
        %s1135 = scalar_lea.vmem %s2, %s1134
      $region40: #{fractal_forward.1} parent=35 // pred_fallthru
        _
    $region36: #{fractal_forward.1} parent=5 // pred_fallthru
      _
  $region6: #{fractal_forward.1} parent=0 // loop_footer
    %s12 = sadd.s32 1, %s8
  $region7: #{fractal_forward.1} parent=0 // loop_footer_branch
    %7 = sbr.rel target = $region3
  $region8: #{fractal_forward.1} parent=0 // loop_exit
    _

</llo_original>
